<compile_context>
chip_gen: v7x
topology: tpu7x:2x2x1
jax: 0.10.0
libtpu: 0.0.40
codegen_flags: <defaults>
</compile_context>

<pallas_src>
import functools

import jax
import jax.numpy as jnp
from jax import lax
from jax.experimental import pallas as pl
from jax.experimental.pallas import tpu as pltpu

EPS = 1e-5
_LANE = 128
_SUBLANE = 8
_MAX_TILE_N = 128          # (128,128) f32 hidden state == 16 vregs per layer
_UNROLL_MAX_P = 32


def _round_up(a, b):
    return (a + b - 1) // b * b


def _device_kind():
    try:
        return jax.devices()[0].device_kind.lower()
    except Exception:  # pragma: no cover - CPU/interpret fallback
        return ""


def _is_multi_tensorcore(kind):
    # v4 / v5p megacore and v7x (2 TC/chip) benefit from >= 2 parallel grid
    # steps; on v5e/v6e (1 TC) splitting only halves the matmul M dim.
    return ("v4" in kind) or ("v5p" in kind) or ("7" in kind)


def _vmem_limit(kind, est_bytes):
    # v7x has 64 MiB VMEM per TensorCore; v5e/v6e have 128 MiB.
    cap = (48 if "7" in kind else 96) * 1024 * 1024
    return int(min(cap, max(32 * 1024 * 1024, 2 * est_bytes)))


# -----------------------------------------------------------------------------
# Pallas kernel
# -----------------------------------------------------------------------------
def _make_prnn_kernel(patch_len, stride, num_layers, Hp, Tp, P, compute_dtype,
                      use_scratch):
    cdt = compute_dtype
    n_extra = num_layers - 1

    def kernel(*refs):
        # refs: x (tile_n, L), aw (tile_n, 1), ab (tile_n, 1),
        #       w_ih0 (patch_len, Hp), w_hh0 (Hp, Hp), b0 (1, Hp),
        #       [w_ih_l (Hp, Hp), w_hh_l (Hp, Hp), b_l (1, Hp)]*,
        #       w_fc (Hp, Tp), b_fc (1, Tp),
        #       out (tile_n, Tp), [pre0 scratch (P, tile_n, Hp)]
        x_ref, aw_ref, ab_ref = refs[0], refs[1], refs[2]
        wih0_ref, whh0_ref, b0_ref = refs[3], refs[4], refs[5]
        layer_refs = refs[6:6 + 3 * n_extra]
        wfc_ref = refs[6 + 3 * n_extra]
        bfc_ref = refs[7 + 3 * n_extra]
        out_ref = refs[8 + 3 * n_extra]
        pre0_ref = refs[9 + 3 * n_extra] if use_scratch else None

        tile_n = x_ref.shape[0]

        x = x_ref[...]                                   # (tile_n, L) f32
        aw = aw_ref[...]                                 # (tile_n, 1)
        ab = ab_ref[...]                                 # (tile_n, 1)

        # ---- RevIN 'norm': two-pass variance (no E[x^2]-E[x]^2 cancellation)
        mean = jnp.mean(x, axis=-1, keepdims=True)
        xc = x - mean
        var = jnp.mean(xc * xc, axis=-1, keepdims=True)
        inv_std = lax.rsqrt(var + EPS)
        std = (var + EPS) * inv_std                      # == sqrt(var + EPS)
        xn = xc * (aw * inv_std) + ab                    # (tile_n, L)

        # ---- hoist all weight / bias loads out of the recurrence -------------
        wih0 = wih0_ref[...]
        whh0 = whh0_ref[...]
        b0 = b0_ref[...]
        wih = [layer_refs[3 * l][...] for l in range(n_extra)]
        whh = [layer_refs[3 * l + 1][...] for l in range(n_extra)]
        bl = [layer_refs[3 * l + 2][...] for l in range(n_extra)]

        def proj0(p):
            # layer-0 input projection of patch p (static slice, tiny K)
            xp = xn[:, p * stride:p * stride + patch_len].astype(cdt)
            return jnp.dot(xp, wih0, preferred_element_type=jnp.float32) + b0

        def one_step(pre0, hs):
            # layer 0
            h = jnp.tanh(pre0 + jnp.dot(hs[0].astype(cdt), whh0,
                                        preferred_element_type=jnp.float32))
            new = [h]
            # layers >= 1: two back-to-back K=Hp matmuls, no concat copy.
            for l in range(n_extra):
                pre = (jnp.dot(h.astype(cdt), wih[l],
                               preferred_element_type=jnp.float32)
                       + jnp.dot(hs[l + 1].astype(cdt), whh[l],
                                 preferred_element_type=jnp.float32)
                       + bl[l])
                h = jnp.tanh(pre)
                new.append(h)
            return new

        hs = [jnp.zeros((tile_n, Hp), jnp.float32) for _ in range(num_layers)]

        if not use_scratch:
            # Small P: fully unrolled; per-step projection hides under the
            # tanh / W_hh chain; no scratch round-trip, no extra VMEM.
            for p in range(P):
                hs = one_step(proj0(p), hs)
        else:
            # Large P: stage the projection once in VMEM scratch (per-patch
            # matmuls, no stack/reshape) and run a x2-unrolled fori_loop.
            for p in range(P):
                pre0_ref[p] = proj0(p).astype(pre0_ref.dtype)

            unroll = 2
            n_main = (P // unroll) * unroll

            def body(it, carry):
                hs_c = list(carry)
                base = it * unroll
                for u in range(unroll):
                    hs_c = one_step(pre0_ref[base + u].astype(jnp.float32),
                                    hs_c)
                return tuple(hs_c)

            hs = list(lax.fori_loop(0, P // unroll, body, tuple(hs)))
            for p in range(n_main, P):              # static tail
                hs = one_step(pre0_ref[p].astype(jnp.float32), hs)

        # ---- final linear head on the last time step of the last layer -------
        out = (jnp.dot(hs[-1].astype(cdt), wfc_ref[...],
                       preferred_element_type=jnp.float32)
               + bfc_ref[...])                           # (tile_n, Tp) f32

        # ---- RevIN 'denorm' (single tiny (tile_n, 1) divide) ------------------
        scale = std / (aw + EPS * EPS)
        out_ref[...] = (out - ab) * scale + mean

    return kernel


# -----------------------------------------------------------------------------
# Wrapper: parameter padding, row tiling, pallas_call
# -----------------------------------------------------------------------------
@functools.partial(jax.jit,
                   static_argnames=("patch_len", "stride", "hidden",
                                    "num_layers", "target", "compute_dtype"))
def prnn_backbone_pallas(x, params, *, patch_len, stride, hidden, num_layers,
                         target, compute_dtype="float32"):
    cdt = jnp.dtype(compute_dtype)
    B, C, L = x.shape
    N = B * C

    # adjust_sequence_for_stride: with floor-div patch counting the pad is
    # statically 0; kept for parity with the PyTorch module.
    P = (L - patch_len) // stride + 1
    pad = max(0, (P - 1) * stride + patch_len - L)
    if pad > 0:
        x = jnp.pad(x, ((0, 0), (0, 0), (0, pad)))
        L = L + pad

    # lane-padded hidden / target widths (zero padding keeps semantics exact)
    Hp = _round_up(max(hidden, _LANE), _LANE)
    Tp = _round_up(max(target, _LANE), _LANE)

    kind = _device_kind()

    # ---- row tiling over N = B*C (multiple of 8 sublanes) ---------------------
    N8 = _round_up(N, _SUBLANE)
    tile_n = min(_MAX_TILE_N, N8)
    if _is_multi_tensorcore(kind) and N8 // tile_n == 1 and N8 >= 2 * _SUBLANE:
        tile_n = _round_up(N8 // 2, _SUBLANE)    # give both TensorCores work
    n_pad = _round_up(N, tile_n)
    grid = (n_pad // tile_n,)

    use_scratch = P > _UNROLL_MAX_P
    scratch_dtype = cdt                           # bf16 halves the scratch

    x2 = x.reshape(N, L).astype(jnp.float32)
    aw = jnp.tile(params["affine_weight"].astype(jnp.float32), B).reshape(N, 1)
    ab = jnp.tile(params["affine_bias"].astype(jnp.float32), B).reshape(N, 1)
    if n_pad > N:
        x2 = jnp.pad(x2, ((0, n_pad - N), (0, 0)))
        # aw padded with 1.0 / ab with 0.0 keeps the denorm divide finite.
        aw = jnp.pad(aw, ((0, n_pad - N), (0, 0)), constant_values=1.0)
        ab = jnp.pad(ab, ((0, n_pad - N), (0, 0)))

    def pad2(m, rows, cols):
        m = m.astype(jnp.float32)
        return jnp.pad(m, ((0, rows - m.shape[0]), (0, cols - m.shape[1])))

    # layer 0
    wih0 = pad2(params["w_ih_0"].T, patch_len, Hp).astype(cdt)
    whh0 = pad2(params["w_hh_0"].T, Hp, Hp).astype(cdt)
    b0 = pad2((params["b_ih_0"] + params["b_hh_0"]).reshape(1, hidden), 1, Hp)

    kernel_args = [x2, aw, ab, wih0, whh0, b0]
    in_specs = [
        pl.BlockSpec((tile_n, L), lambda i: (i, 0)),
        pl.BlockSpec((tile_n, 1), lambda i: (i, 0)),
        pl.BlockSpec((tile_n, 1), lambda i: (i, 0)),
        pl.BlockSpec(wih0.shape, lambda i: (0, 0)),
        pl.BlockSpec(whh0.shape, lambda i: (0, 0)),
        pl.BlockSpec(b0.shape, lambda i: (0, 0)),
    ]

    # layers >= 1: separate W_ih / W_hh (two K=Hp matmuls per step, no concat)
    for layer in range(1, num_layers):
        wi = pad2(params[f"w_ih_{layer}"].T, Hp, Hp).astype(cdt)
        wh = pad2(params[f"w_hh_{layer}"].T, Hp, Hp).astype(cdt)
        bf = pad2((params[f"b_ih_{layer}"]
                   + params[f"b_hh_{layer}"]).reshape(1, hidden), 1, Hp)
        kernel_args += [wi, wh, bf]
        in_specs += [pl.BlockSpec(wi.shape, lambda i: (0, 0)),
                     pl.BlockSpec(wh.shape, lambda i: (0, 0)),
                     pl.BlockSpec(bf.shape, lambda i: (0, 0))]

    wfc = pad2(params["w_fc"].T, Hp, Tp).astype(cdt)            # (Hp, Tp)
    bfc = pad2(params["b_fc"].reshape(1, target), 1, Tp)        # (1, Tp)
    kernel_args += [wfc, bfc]
    in_specs += [pl.BlockSpec(wfc.shape, lambda i: (0, 0)),
                 pl.BlockSpec(bfc.shape, lambda i: (0, 0))]

    # ---- demand-driven VMEM budget --------------------------------------------
    csz = jnp.dtype(cdt).itemsize
    est = (2 * tile_n * (L + Tp + 2) * 4                        # x, out, aw, ab
           + 2 * ((patch_len * Hp + Hp * Hp) * csz + Hp * 4)    # layer-0 weights
           + 2 * (num_layers - 1) * (2 * Hp * Hp * csz + Hp * 4)
           + 2 * (Hp * Tp * csz + Tp * 4))
    scratch_shapes = []
    if use_scratch:
        scratch_shapes = [pltpu.VMEM((P, tile_n, Hp), scratch_dtype)]
        est += P * tile_n * Hp * jnp.dtype(scratch_dtype).itemsize

    kernel = _make_prnn_kernel(patch_len, stride, num_layers, Hp, Tp, P, cdt,
                               use_scratch)

    out_p = pl.pallas_call(
        kernel,
        out_shape=jax.ShapeDtypeStruct((n_pad, Tp), jnp.float32),
        grid=grid,
        in_specs=in_specs,
        out_specs=pl.BlockSpec((tile_n, Tp), lambda i: (i, 0)),
        scratch_shapes=scratch_shapes,
        compiler_params=pltpu.CompilerParams(
            dimension_semantics=("parallel",),
            vmem_limit_bytes=_vmem_limit(kind, est)),
    )(*kernel_args)

    return out_p[:N, :target].reshape(B, C, target)


# -----------------------------------------------------------------------------
# Pure-JAX reference mirroring the PyTorch forward (correctness check)
# -----------------------------------------------------------------------------
def prnn_backbone_ref(x, params, *, patch_len, stride, hidden, num_layers,
                      target):
    B, C, L = x.shape
    aw = params["affine_weight"]
    ab = params["affine_bias"]

    # RevIN norm
    xt = jnp.transpose(x, (0, 2, 1))                       # (B, L, C)
    mean = jnp.mean(xt, axis=1, keepdims=True)
    std = jnp.sqrt(jnp.var(xt, axis=1, keepdims=True) + EPS)
    xn = (xt - mean) / std * aw + ab
    xn = jnp.transpose(xn, (0, 2, 1))                      # (B, C, L)

    # patches
    P = (L - patch_len) // stride + 1
    patches = jnp.stack(
        [xn[:, :, p * stride:p * stride + patch_len] for p in range(P)],
        axis=2)                                            # (B, C, P, p_len)
    seq = patches.reshape(B * C, P, patch_len)

    # multi-layer tanh RNN
    hs = [jnp.zeros((B * C, hidden), jnp.float32) for _ in range(num_layers)]
    for p in range(P):
        inp = seq[:, p, :]
        for layer in range(num_layers):
            hs[layer] = jnp.tanh(
                inp @ params[f"w_ih_{layer}"].T + params[f"b_ih_{layer}"]
                + hs[layer] @ params[f"w_hh_{layer}"].T
                + params[f"b_hh_{layer}"])
            inp = hs[layer]

    out = hs[-1] @ params["w_fc"].T + params["b_fc"]       # (B*C, T)
    out = out.reshape(B, C, target)

    # RevIN denorm
    ot = jnp.transpose(out, (0, 2, 1))                     # (B, T, C)
    ot = (ot - ab) / (aw + EPS * EPS) * std + mean
    return jnp.transpose(ot, (0, 2, 1))                    # (B, C, T)


# -----------------------------------------------------------------------------
if __name__ == "__main__":
    B = 2                  # batch
    C_IN = 4               # c_in (channels)
    CONTEXT = 16           # context_window (seq_len)  -> P = 7 (unrolled path)
    TARGET = 8             # target_window
    PATCH_LEN = 4
    STRIDE = 2
    HIDDEN = 32
    NUM_LAYERS = 2

    key = jax.random.PRNGKey(0)
    keys = jax.random.split(key, 4 * NUM_LAYERS + 5)

    params = {
        "affine_weight": jnp.ones((C_IN,), jnp.float32),
        "affine_bias": jnp.zeros((C_IN,), jnp.float32),
    }
    ki = 0
    for layer in range(NUM_LAYERS):
        in_l = PATCH_LEN if layer == 0 else HIDDEN
        params[f"w_ih_{layer}"] = 0.1 * jax.random.normal(
            keys[ki], (HIDDEN, in_l), jnp.float32); ki += 1
        params[f"w_hh_{layer}"] = 0.1 * jax.random.normal(
            keys[ki], (HIDDEN, HIDDEN), jnp.float32); ki += 1
        params[f"b_ih_{layer}"] = 0.1 * jax.random.normal(
            keys[ki], (HIDDEN,), jnp.float32); ki += 1
        params[f"b_hh_{layer}"] = 0.1 * jax.random.normal(
            keys[ki], (HIDDEN,), jnp.float32); ki += 1
    params["w_fc"] = 0.1 * jax.random.normal(
        keys[ki], (TARGET, HIDDEN), jnp.float32); ki += 1
    params["b_fc"] = 0.1 * jax.random.normal(
        keys[ki], (TARGET,), jnp.float32); ki += 1

    x = jax.random.normal(keys[ki], (B, C_IN, CONTEXT), jnp.float32); ki += 1

    cfg = dict(patch_len=PATCH_LEN, stride=STRIDE, hidden=HIDDEN,
               num_layers=NUM_LAYERS, target=TARGET)

    with jax.default_matmul_precision("float32"):
        ref = prnn_backbone_ref(x, params, **cfg)

    # f32 matmul-operand path
    out = jax.block_until_ready(prnn_backbone_pallas(x, params, **cfg))
    assert out.shape == (B, C_IN, TARGET)
    assert jnp.allclose(out, ref, atol=5e-3, rtol=5e-3), (
        f"f32 max abs err {float(jnp.max(jnp.abs(out - ref)))}")

    # bf16 matmul operands, f32 accumulation (good on every MXU generation)
    out_bf = jax.block_until_ready(
        prnn_backbone_pallas(x, params, compute_dtype="bfloat16", **cfg))
    assert jnp.allclose(out_bf, ref, atol=5e-2, rtol=5e-2), (
        f"bf16 max abs err {float(jnp.max(jnp.abs(out_bf - ref)))}")

    # Exercise the large-P (scratch + x2-unrolled fori_loop) path: P = 35 > 32
    CONTEXT_LONG = 72
    x_long = jax.random.normal(keys[ki], (B, C_IN, CONTEXT_LONG), jnp.float32)
    with jax.default_matmul_precision("float32"):
        ref_long = prnn_backbone_ref(x_long, params, **cfg)
    out_long = jax.block_until_ready(prnn_backbone_pallas(x_long, params, **cfg))
    assert jnp.allclose(out_long, ref_long, atol=1e-2, rtol=1e-2), (
        f"large-P max abs err {float(jnp.max(jnp.abs(out_long - ref_long)))}")

    print("KERNEL_OK")
</pallas_src>

<mosaic_0001>
module attributes {stable_mosaic.version = 11 : i64} {
  func.func @kernel(%arg0: i32, %arg1: memref<8x16xf32, #tpu.memory_space<vmem>>, %arg2: memref<8x1xf32, #tpu.memory_space<vmem>>, %arg3: memref<8x1xf32, #tpu.memory_space<vmem>>, %arg4: memref<4x128xf32, #tpu.memory_space<vmem>>, %arg5: memref<128x128xf32, #tpu.memory_space<vmem>>, %arg6: memref<1x128xf32, #tpu.memory_space<vmem>>, %arg7: memref<128x128xf32, #tpu.memory_space<vmem>>, %arg8: memref<128x128xf32, #tpu.memory_space<vmem>>, %arg9: memref<1x128xf32, #tpu.memory_space<vmem>>, %arg10: memref<128x128xf32, #tpu.memory_space<vmem>>, %arg11: memref<1x128xf32, #tpu.memory_space<vmem>>, %arg12: memref<8x128xf32, #tpu.memory_space<vmem>>) attributes {dimension_semantics = [#tpu.dimension_semantics<parallel>], iteration_bounds = array<i64: 1>, scalar_prefetch = 0 : i64, scratch_operands = 0 : i64, tpu.core_type = #tpu.core_type<tc>, window_params = [{transform_indices = @transform_0, window_bounds = array<i64: 8, 16>}, {transform_indices = @transform_1, window_bounds = array<i64: 8, 1>}, {transform_indices = @transform_2, window_bounds = array<i64: 8, 1>}, {pipeline_mode = #tpu.pipeline_mode<synchronous>, transform_indices = @transform_3, window_bounds = array<i64: 4, 128>}, {pipeline_mode = #tpu.pipeline_mode<synchronous>, transform_indices = @transform_4, window_bounds = array<i64: 128, 128>}, {pipeline_mode = #tpu.pipeline_mode<synchronous>, transform_indices = @transform_5, window_bounds = array<i64: 1, 128>}, {pipeline_mode = #tpu.pipeline_mode<synchronous>, transform_indices = @transform_6, window_bounds = array<i64: 128, 128>}, {pipeline_mode = #tpu.pipeline_mode<synchronous>, transform_indices = @transform_7, window_bounds = array<i64: 128, 128>}, {pipeline_mode = #tpu.pipeline_mode<synchronous>, transform_indices = @transform_8, window_bounds = array<i64: 1, 128>}, {pipeline_mode = #tpu.pipeline_mode<synchronous>, transform_indices = @transform_9, window_bounds = array<i64: 128, 128>}, {pipeline_mode = #tpu.pipeline_mode<synchronous>, transform_indices = @transform_10, window_bounds = array<i64: 1, 128>}, {transform_indices = @transform_11, window_bounds = array<i64: 8, 128>}]} {
    %c0 = arith.constant 0 : index
    %c0_0 = arith.constant 0 : index
    %0 = vector.load %arg1[%c0, %c0_0] : memref<8x16xf32, #tpu.memory_space<vmem>>, vector<8x16xf32>
    %c0_1 = arith.constant 0 : index
    %c0_2 = arith.constant 0 : index
    %1 = vector.load %arg2[%c0_1, %c0_2] : memref<8x1xf32, #tpu.memory_space<vmem>>, vector<8x1xf32>
    %c0_3 = arith.constant 0 : index
    %c0_4 = arith.constant 0 : index
    %2 = vector.load %arg3[%c0_3, %c0_4] : memref<8x1xf32, #tpu.memory_space<vmem>>, vector<8x1xf32>
    %cst = arith.constant dense<0.000000e+00> : vector<8xf32>
    %3 = vector.multi_reduction <add>, %0, %cst [1] : vector<8x16xf32> to vector<8xf32>
    %4 = vector.shape_cast %3 : vector<8xf32> to vector<8x1xf32>
    %cst_5 = arith.constant 1.600000e+01 : f32
    %5 = vector.broadcast %cst_5 : f32 to vector<8x1xf32>
    %6 = arith.divf %4, %5 : vector<8x1xf32>
    %7 = vector.broadcast %6 : vector<8x1xf32> to vector<8x16xf32>
    %8 = arith.subf %0, %7 : vector<8x16xf32>
    %9 = arith.mulf %8, %8 : vector<8x16xf32>
    %cst_6 = arith.constant dense<0.000000e+00> : vector<8xf32>
    %10 = vector.multi_reduction <add>, %9, %cst_6 [1] : vector<8x16xf32> to vector<8xf32>
    %11 = vector.shape_cast %10 : vector<8xf32> to vector<8x1xf32>
    %cst_7 = arith.constant 1.600000e+01 : f32
    %12 = vector.broadcast %cst_7 : f32 to vector<8x1xf32>
    %13 = arith.divf %11, %12 : vector<8x1xf32>
    %cst_8 = arith.constant 9.99999974E-6 : f32
    %14 = vector.broadcast %cst_8 : f32 to vector<8x1xf32>
    %15 = arith.addf %13, %14 : vector<8x1xf32>
    %16 = math.rsqrt %15 : vector<8x1xf32>
    %cst_9 = arith.constant 9.99999974E-6 : f32
    %17 = vector.broadcast %cst_9 : f32 to vector<8x1xf32>
    %18 = arith.addf %13, %17 : vector<8x1xf32>
    %19 = arith.mulf %18, %16 : vector<8x1xf32>
    %20 = arith.mulf %1, %16 : vector<8x1xf32>
    %21 = vector.broadcast %20 : vector<8x1xf32> to vector<8x16xf32>
    %22 = arith.mulf %8, %21 : vector<8x16xf32>
    %23 = vector.broadcast %2 : vector<8x1xf32> to vector<8x16xf32>
    %24 = arith.addf %22, %23 : vector<8x16xf32>
    %c0_10 = arith.constant 0 : index
    %c0_11 = arith.constant 0 : index
    %25 = vector.load %arg4[%c0_10, %c0_11] : memref<4x128xf32, #tpu.memory_space<vmem>>, vector<4x128xf32>
    %c0_12 = arith.constant 0 : index
    %c0_13 = arith.constant 0 : index
    %26 = vector.load %arg5[%c0_12, %c0_13] : memref<128x128xf32, #tpu.memory_space<vmem>>, vector<128x128xf32>
    %c0_14 = arith.constant 0 : index
    %c0_15 = arith.constant 0 : index
    %27 = vector.load %arg6[%c0_14, %c0_15] : memref<1x128xf32, #tpu.memory_space<vmem>>, vector<1x128xf32>
    %c0_16 = arith.constant 0 : index
    %c0_17 = arith.constant 0 : index
    %28 = vector.load %arg7[%c0_16, %c0_17] : memref<128x128xf32, #tpu.memory_space<vmem>>, vector<128x128xf32>
    %c0_18 = arith.constant 0 : index
    %c0_19 = arith.constant 0 : index
    %29 = vector.load %arg8[%c0_18, %c0_19] : memref<128x128xf32, #tpu.memory_space<vmem>>, vector<128x128xf32>
    %c0_20 = arith.constant 0 : index
    %c0_21 = arith.constant 0 : index
    %30 = vector.load %arg9[%c0_20, %c0_21] : memref<1x128xf32, #tpu.memory_space<vmem>>, vector<1x128xf32>
    %cst_22 = arith.constant 0.000000e+00 : f32
    %31 = vector.broadcast %cst_22 : f32 to vector<8x128xf32>
    %cst_23 = arith.constant 0.000000e+00 : f32
    %32 = vector.broadcast %cst_23 : f32 to vector<8x128xf32>
    %33 = vector.extract_strided_slice %24 {offsets = [0, 0], sizes = [8, 4], strides = [1, 1]} : vector<8x16xf32> to vector<8x4xf32>
    %cst_24 = arith.constant dense<0.000000e+00> : vector<8x128xf32>
    %34 = tpu.matmul %33, %25, %cst_24 {dimension_numbers = #tpu.dot_dimension_numbers<[1], [0], [0], [1], [0, 0, 1, 1], [], []>} : vector<8x4xf32>, vector<4x128xf32>, vector<8x128xf32> -> vector<8x128xf32>
    %35 = vector.broadcast %27 : vector<1x128xf32> to vector<8x128xf32>
    %36 = arith.addf %34, %35 : vector<8x128xf32>
    %cst_25 = arith.constant dense<0.000000e+00> : vector<8x128xf32>
    %37 = tpu.matmul %31, %26, %cst_25 {dimension_numbers = #tpu.dot_dimension_numbers<[1], [0], [0], [1], [0, 0, 1, 1], [], []>} : vector<8x128xf32>, vector<128x128xf32>, vector<8x128xf32> -> vector<8x128xf32>
    %38 = arith.addf %36, %37 : vector<8x128xf32>
    %39 = math.tanh %38 : vector<8x128xf32>
    %cst_26 = arith.constant dense<0.000000e+00> : vector<8x128xf32>
    %40 = tpu.matmul %39, %28, %cst_26 {dimension_numbers = #tpu.dot_dimension_numbers<[1], [0], [0], [1], [0, 0, 1, 1], [], []>} : vector<8x128xf32>, vector<128x128xf32>, vector<8x128xf32> -> vector<8x128xf32>
    %cst_27 = arith.constant dense<0.000000e+00> : vector<8x128xf32>
    %41 = tpu.matmul %32, %29, %cst_27 {dimension_numbers = #tpu.dot_dimension_numbers<[1], [0], [0], [1], [0, 0, 1, 1], [], []>} : vector<8x128xf32>, vector<128x128xf32>, vector<8x128xf32> -> vector<8x128xf32>
    %42 = arith.addf %40, %41 : vector<8x128xf32>
    %43 = vector.broadcast %30 : vector<1x128xf32> to vector<8x128xf32>
    %44 = arith.addf %42, %43 : vector<8x128xf32>
    %45 = math.tanh %44 : vector<8x128xf32>
    %46 = vector.extract_strided_slice %24 {offsets = [0, 2], sizes = [8, 4], strides = [1, 1]} : vector<8x16xf32> to vector<8x4xf32>
    %cst_28 = arith.constant dense<0.000000e+00> : vector<8x128xf32>
    %47 = tpu.matmul %46, %25, %cst_28 {dimension_numbers = #tpu.dot_dimension_numbers<[1], [0], [0], [1], [0, 0, 1, 1], [], []>} : vector<8x4xf32>, vector<4x128xf32>, vector<8x128xf32> -> vector<8x128xf32>
    %48 = vector.broadcast %27 : vector<1x128xf32> to vector<8x128xf32>
    %49 = arith.addf %47, %48 : vector<8x128xf32>
    %cst_29 = arith.constant dense<0.000000e+00> : vector<8x128xf32>
    %50 = tpu.matmul %39, %26, %cst_29 {dimension_numbers = #tpu.dot_dimension_numbers<[1], [0], [0], [1], [0, 0, 1, 1], [], []>} : vector<8x128xf32>, vector<128x128xf32>, vector<8x128xf32> -> vector<8x128xf32>
    %51 = arith.addf %49, %50 : vector<8x128xf32>
    %52 = math.tanh %51 : vector<8x128xf32>
    %cst_30 = arith.constant dense<0.000000e+00> : vector<8x128xf32>
    %53 = tpu.matmul %52, %28, %cst_30 {dimension_numbers = #tpu.dot_dimension_numbers<[1], [0], [0], [1], [0, 0, 1, 1], [], []>} : vector<8x128xf32>, vector<128x128xf32>, vector<8x128xf32> -> vector<8x128xf32>
    %cst_31 = arith.constant dense<0.000000e+00> : vector<8x128xf32>
    %54 = tpu.matmul %45, %29, %cst_31 {dimension_numbers = #tpu.dot_dimension_numbers<[1], [0], [0], [1], [0, 0, 1, 1], [], []>} : vector<8x128xf32>, vector<128x128xf32>, vector<8x128xf32> -> vector<8x128xf32>
    %55 = arith.addf %53, %54 : vector<8x128xf32>
    %56 = vector.broadcast %30 : vector<1x128xf32> to vector<8x128xf32>
    %57 = arith.addf %55, %56 : vector<8x128xf32>
    %58 = math.tanh %57 : vector<8x128xf32>
    %59 = vector.extract_strided_slice %24 {offsets = [0, 4], sizes = [8, 4], strides = [1, 1]} : vector<8x16xf32> to vector<8x4xf32>
    %cst_32 = arith.constant dense<0.000000e+00> : vector<8x128xf32>
    %60 = tpu.matmul %59, %25, %cst_32 {dimension_numbers = #tpu.dot_dimension_numbers<[1], [0], [0], [1], [0, 0, 1, 1], [], []>} : vector<8x4xf32>, vector<4x128xf32>, vector<8x128xf32> -> vector<8x128xf32>
    %61 = vector.broadcast %27 : vector<1x128xf32> to vector<8x128xf32>
    %62 = arith.addf %60, %61 : vector<8x128xf32>
    %cst_33 = arith.constant dense<0.000000e+00> : vector<8x128xf32>
    %63 = tpu.matmul %52, %26, %cst_33 {dimension_numbers = #tpu.dot_dimension_numbers<[1], [0], [0], [1], [0, 0, 1, 1], [], []>} : vector<8x128xf32>, vector<128x128xf32>, vector<8x128xf32> -> vector<8x128xf32>
    %64 = arith.addf %62, %63 : vector<8x128xf32>
    %65 = math.tanh %64 : vector<8x128xf32>
    %cst_34 = arith.constant dense<0.000000e+00> : vector<8x128xf32>
    %66 = tpu.matmul %65, %28, %cst_34 {dimension_numbers = #tpu.dot_dimension_numbers<[1], [0], [0], [1], [0, 0, 1, 1], [], []>} : vector<8x128xf32>, vector<128x128xf32>, vector<8x128xf32> -> vector<8x128xf32>
    %cst_35 = arith.constant dense<0.000000e+00> : vector<8x128xf32>
    %67 = tpu.matmul %58, %29, %cst_35 {dimension_numbers = #tpu.dot_dimension_numbers<[1], [0], [0], [1], [0, 0, 1, 1], [], []>} : vector<8x128xf32>, vector<128x128xf32>, vector<8x128xf32> -> vector<8x128xf32>
    %68 = arith.addf %66, %67 : vector<8x128xf32>
    %69 = vector.broadcast %30 : vector<1x128xf32> to vector<8x128xf32>
    %70 = arith.addf %68, %69 : vector<8x128xf32>
    %71 = math.tanh %70 : vector<8x128xf32>
    %72 = vector.extract_strided_slice %24 {offsets = [0, 6], sizes = [8, 4], strides = [1, 1]} : vector<8x16xf32> to vector<8x4xf32>
    %cst_36 = arith.constant dense<0.000000e+00> : vector<8x128xf32>
    %73 = tpu.matmul %72, %25, %cst_36 {dimension_numbers = #tpu.dot_dimension_numbers<[1], [0], [0], [1], [0, 0, 1, 1], [], []>} : vector<8x4xf32>, vector<4x128xf32>, vector<8x128xf32> -> vector<8x128xf32>
    %74 = vector.broadcast %27 : vector<1x128xf32> to vector<8x128xf32>
    %75 = arith.addf %73, %74 : vector<8x128xf32>
    %cst_37 = arith.constant dense<0.000000e+00> : vector<8x128xf32>
    %76 = tpu.matmul %65, %26, %cst_37 {dimension_numbers = #tpu.dot_dimension_numbers<[1], [0], [0], [1], [0, 0, 1, 1], [], []>} : vector<8x128xf32>, vector<128x128xf32>, vector<8x128xf32> -> vector<8x128xf32>
    %77 = arith.addf %75, %76 : vector<8x128xf32>
    %78 = math.tanh %77 : vector<8x128xf32>
    %cst_38 = arith.constant dense<0.000000e+00> : vector<8x128xf32>
    %79 = tpu.matmul %78, %28, %cst_38 {dimension_numbers = #tpu.dot_dimension_numbers<[1], [0], [0], [1], [0, 0, 1, 1], [], []>} : vector<8x128xf32>, vector<128x128xf32>, vector<8x128xf32> -> vector<8x128xf32>
    %cst_39 = arith.constant dense<0.000000e+00> : vector<8x128xf32>
    %80 = tpu.matmul %71, %29, %cst_39 {dimension_numbers = #tpu.dot_dimension_numbers<[1], [0], [0], [1], [0, 0, 1, 1], [], []>} : vector<8x128xf32>, vector<128x128xf32>, vector<8x128xf32> -> vector<8x128xf32>
    %81 = arith.addf %79, %80 : vector<8x128xf32>
    %82 = vector.broadcast %30 : vector<1x128xf32> to vector<8x128xf32>
    %83 = arith.addf %81, %82 : vector<8x128xf32>
    %84 = math.tanh %83 : vector<8x128xf32>
    %85 = vector.extract_strided_slice %24 {offsets = [0, 8], sizes = [8, 4], strides = [1, 1]} : vector<8x16xf32> to vector<8x4xf32>
    %cst_40 = arith.constant dense<0.000000e+00> : vector<8x128xf32>
    %86 = tpu.matmul %85, %25, %cst_40 {dimension_numbers = #tpu.dot_dimension_numbers<[1], [0], [0], [1], [0, 0, 1, 1], [], []>} : vector<8x4xf32>, vector<4x128xf32>, vector<8x128xf32> -> vector<8x128xf32>
    %87 = vector.broadcast %27 : vector<1x128xf32> to vector<8x128xf32>
    %88 = arith.addf %86, %87 : vector<8x128xf32>
    %cst_41 = arith.constant dense<0.000000e+00> : vector<8x128xf32>
    %89 = tpu.matmul %78, %26, %cst_41 {dimension_numbers = #tpu.dot_dimension_numbers<[1], [0], [0], [1], [0, 0, 1, 1], [], []>} : vector<8x128xf32>, vector<128x128xf32>, vector<8x128xf32> -> vector<8x128xf32>
    %90 = arith.addf %88, %89 : vector<8x128xf32>
    %91 = math.tanh %90 : vector<8x128xf32>
    %cst_42 = arith.constant dense<0.000000e+00> : vector<8x128xf32>
    %92 = tpu.matmul %91, %28, %cst_42 {dimension_numbers = #tpu.dot_dimension_numbers<[1], [0], [0], [1], [0, 0, 1, 1], [], []>} : vector<8x128xf32>, vector<128x128xf32>, vector<8x128xf32> -> vector<8x128xf32>
    %cst_43 = arith.constant dense<0.000000e+00> : vector<8x128xf32>
    %93 = tpu.matmul %84, %29, %cst_43 {dimension_numbers = #tpu.dot_dimension_numbers<[1], [0], [0], [1], [0, 0, 1, 1], [], []>} : vector<8x128xf32>, vector<128x128xf32>, vector<8x128xf32> -> vector<8x128xf32>
    %94 = arith.addf %92, %93 : vector<8x128xf32>
    %95 = vector.broadcast %30 : vector<1x128xf32> to vector<8x128xf32>
    %96 = arith.addf %94, %95 : vector<8x128xf32>
    %97 = math.tanh %96 : vector<8x128xf32>
    %98 = vector.extract_strided_slice %24 {offsets = [0, 10], sizes = [8, 4], strides = [1, 1]} : vector<8x16xf32> to vector<8x4xf32>
    %cst_44 = arith.constant dense<0.000000e+00> : vector<8x128xf32>
    %99 = tpu.matmul %98, %25, %cst_44 {dimension_numbers = #tpu.dot_dimension_numbers<[1], [0], [0], [1], [0, 0, 1, 1], [], []>} : vector<8x4xf32>, vector<4x128xf32>, vector<8x128xf32> -> vector<8x128xf32>
    %100 = vector.broadcast %27 : vector<1x128xf32> to vector<8x128xf32>
    %101 = arith.addf %99, %100 : vector<8x128xf32>
    %cst_45 = arith.constant dense<0.000000e+00> : vector<8x128xf32>
    %102 = tpu.matmul %91, %26, %cst_45 {dimension_numbers = #tpu.dot_dimension_numbers<[1], [0], [0], [1], [0, 0, 1, 1], [], []>} : vector<8x128xf32>, vector<128x128xf32>, vector<8x128xf32> -> vector<8x128xf32>
    %103 = arith.addf %101, %102 : vector<8x128xf32>
    %104 = math.tanh %103 : vector<8x128xf32>
    %cst_46 = arith.constant dense<0.000000e+00> : vector<8x128xf32>
    %105 = tpu.matmul %104, %28, %cst_46 {dimension_numbers = #tpu.dot_dimension_numbers<[1], [0], [0], [1], [0, 0, 1, 1], [], []>} : vector<8x128xf32>, vector<128x128xf32>, vector<8x128xf32> -> vector<8x128xf32>
    %cst_47 = arith.constant dense<0.000000e+00> : vector<8x128xf32>
    %106 = tpu.matmul %97, %29, %cst_47 {dimension_numbers = #tpu.dot_dimension_numbers<[1], [0], [0], [1], [0, 0, 1, 1], [], []>} : vector<8x128xf32>, vector<128x128xf32>, vector<8x128xf32> -> vector<8x128xf32>
    %107 = arith.addf %105, %106 : vector<8x128xf32>
    %108 = vector.broadcast %30 : vector<1x128xf32> to vector<8x128xf32>
    %109 = arith.addf %107, %108 : vector<8x128xf32>
    %110 = math.tanh %109 : vector<8x128xf32>
    %111 = vector.extract_strided_slice %24 {offsets = [0, 12], sizes = [8, 4], strides = [1, 1]} : vector<8x16xf32> to vector<8x4xf32>
    %cst_48 = arith.constant dense<0.000000e+00> : vector<8x128xf32>
    %112 = tpu.matmul %111, %25, %cst_48 {dimension_numbers = #tpu.dot_dimension_numbers<[1], [0], [0], [1], [0, 0, 1, 1], [], []>} : vector<8x4xf32>, vector<4x128xf32>, vector<8x128xf32> -> vector<8x128xf32>
    %113 = vector.broadcast %27 : vector<1x128xf32> to vector<8x128xf32>
    %114 = arith.addf %112, %113 : vector<8x128xf32>
    %cst_49 = arith.constant dense<0.000000e+00> : vector<8x128xf32>
    %115 = tpu.matmul %104, %26, %cst_49 {dimension_numbers = #tpu.dot_dimension_numbers<[1], [0], [0], [1], [0, 0, 1, 1], [], []>} : vector<8x128xf32>, vector<128x128xf32>, vector<8x128xf32> -> vector<8x128xf32>
    %116 = arith.addf %114, %115 : vector<8x128xf32>
    %117 = math.tanh %116 : vector<8x128xf32>
    %cst_50 = arith.constant dense<0.000000e+00> : vector<8x128xf32>
    %118 = tpu.matmul %117, %28, %cst_50 {dimension_numbers = #tpu.dot_dimension_numbers<[1], [0], [0], [1], [0, 0, 1, 1], [], []>} : vector<8x128xf32>, vector<128x128xf32>, vector<8x128xf32> -> vector<8x128xf32>
    %cst_51 = arith.constant dense<0.000000e+00> : vector<8x128xf32>
    %119 = tpu.matmul %110, %29, %cst_51 {dimension_numbers = #tpu.dot_dimension_numbers<[1], [0], [0], [1], [0, 0, 1, 1], [], []>} : vector<8x128xf32>, vector<128x128xf32>, vector<8x128xf32> -> vector<8x128xf32>
    %120 = arith.addf %118, %119 : vector<8x128xf32>
    %121 = vector.broadcast %30 : vector<1x128xf32> to vector<8x128xf32>
    %122 = arith.addf %120, %121 : vector<8x128xf32>
    %123 = math.tanh %122 : vector<8x128xf32>
    %c0_52 = arith.constant 0 : index
    %c0_53 = arith.constant 0 : index
    %124 = vector.load %arg10[%c0_52, %c0_53] : memref<128x128xf32, #tpu.memory_space<vmem>>, vector<128x128xf32>
    %cst_54 = arith.constant dense<0.000000e+00> : vector<8x128xf32>
    %125 = tpu.matmul %123, %124, %cst_54 {dimension_numbers = #tpu.dot_dimension_numbers<[1], [0], [0], [1], [0, 0, 1, 1], [], []>} : vector<8x128xf32>, vector<128x128xf32>, vector<8x128xf32> -> vector<8x128xf32>
    %c0_55 = arith.constant 0 : index
    %c0_56 = arith.constant 0 : index
    %126 = vector.load %arg11[%c0_55, %c0_56] : memref<1x128xf32, #tpu.memory_space<vmem>>, vector<1x128xf32>
    %127 = vector.broadcast %126 : vector<1x128xf32> to vector<8x128xf32>
    %128 = arith.addf %125, %127 : vector<8x128xf32>
    %cst_57 = arith.constant 1.000000e-10 : f32
    %129 = vector.broadcast %cst_57 : f32 to vector<8x1xf32>
    %130 = arith.addf %1, %129 : vector<8x1xf32>
    %131 = arith.divf %19, %130 : vector<8x1xf32>
    %132 = vector.broadcast %2 : vector<8x1xf32> to vector<8x128xf32>
    %133 = arith.subf %128, %132 : vector<8x128xf32>
    %134 = vector.broadcast %131 : vector<8x1xf32> to vector<8x128xf32>
    %135 = arith.mulf %133, %134 : vector<8x128xf32>
    %136 = vector.broadcast %6 : vector<8x1xf32> to vector<8x128xf32>
    %137 = arith.addf %135, %136 : vector<8x128xf32>
    %c0_58 = arith.constant 0 : index
    %c0_59 = arith.constant 0 : index
    %138 = vector.load %arg12[%c0_58, %c0_59] : memref<8x128xf32, #tpu.memory_space<vmem>>, vector<8x128xf32>
    tpu.vector_store %arg12[%c0_58, %c0_59], %137 {strides = array<i32>} : memref<8x128xf32, #tpu.memory_space<vmem>>, vector<8x128xf32>,
    return
  }
  func.func @transform_0(%arg0: i32) -> (i32, i32) {
    %c0_i32 = arith.constant 0 : i32
    %c0_i32_0 = arith.constant 0 : i32
    return %arg0, %c0_i32 : i32, i32
  }
  func.func @transform_1(%arg0: i32) -> (i32, i32) {
    %c0_i32 = arith.constant 0 : i32
    %c0_i32_0 = arith.constant 0 : i32
    return %arg0, %c0_i32 : i32, i32
  }
  func.func @transform_2(%arg0: i32) -> (i32, i32) {
    %c0_i32 = arith.constant 0 : i32
    %c0_i32_0 = arith.constant 0 : i32
    return %arg0, %c0_i32 : i32, i32
  }
  func.func @transform_3(%arg0: i32) -> (i32, i32) {
    %c0_i32 = arith.constant 0 : i32
    %c0_i32_0 = arith.constant 0 : i32
    %c0_i32_1 = arith.constant 0 : i32
    return %c0_i32, %c0_i32_0 : i32, i32
  }
  func.func @transform_4(%arg0: i32) -> (i32, i32) {
    %c0_i32 = arith.constant 0 : i32
    %c0_i32_0 = arith.constant 0 : i32
    %c0_i32_1 = arith.constant 0 : i32
    return %c0_i32, %c0_i32_0 : i32, i32
  }
  func.func @transform_5(%arg0: i32) -> (i32, i32) {
    %c0_i32 = arith.constant 0 : i32
    %c0_i32_0 = arith.constant 0 : i32
    %c0_i32_1 = arith.constant 0 : i32
    return %c0_i32, %c0_i32_0 : i32, i32
  }
  func.func @transform_6(%arg0: i32) -> (i32, i32) {
    %c0_i32 = arith.constant 0 : i32
    %c0_i32_0 = arith.constant 0 : i32
    %c0_i32_1 = arith.constant 0 : i32
    return %c0_i32, %c0_i32_0 : i32, i32
  }
  func.func @transform_7(%arg0: i32) -> (i32, i32) {
    %c0_i32 = arith.constant 0 : i32
    %c0_i32_0 = arith.constant 0 : i32
    %c0_i32_1 = arith.constant 0 : i32
    return %c0_i32, %c0_i32_0 : i32, i32
  }
  func.func @transform_8(%arg0: i32) -> (i32, i32) {
    %c0_i32 = arith.constant 0 : i32
    %c0_i32_0 = arith.constant 0 : i32
    %c0_i32_1 = arith.constant 0 : i32
    return %c0_i32, %c0_i32_0 : i32, i32
  }
  func.func @transform_9(%arg0: i32) -> (i32, i32) {
    %c0_i32 = arith.constant 0 : i32
    %c0_i32_0 = arith.constant 0 : i32
    %c0_i32_1 = arith.constant 0 : i32
    return %c0_i32, %c0_i32_0 : i32, i32
  }
  func.func @transform_10(%arg0: i32) -> (i32, i32) {
    %c0_i32 = arith.constant 0 : i32
    %c0_i32_0 = arith.constant 0 : i32
    %c0_i32_1 = arith.constant 0 : i32
    return %c0_i32, %c0_i32_0 : i32, i32
  }
  func.func @transform_11(%arg0: i32) -> (i32, i32) {
    %c0_i32 = arith.constant 0 : i32
    %c0_i32_0 = arith.constant 0 : i32
    return %arg0, %c0_i32 : i32, i32
  }
}

</mosaic_0001>

<llo_original>
// kernel: tile.13
$region0: #{tile.13}
  #allocation0 [shape = 's32[1]{0}', space=sflag, size = 0x4, scoped, tag = 'scoped memory for tile.13']
  %s0 = inlined_call_operand.vmem [shape: f32[4], index: 0, kind: input, shape index: {}]
  %s1 = inlined_call_operand.vmem [shape: f32[2,4], index: 1, kind: output, shape index: {}]
  // Predicated region
  $region2: #{tile.13} parent=0 // pred_check
    _
  $region3: #{tile.13} parent=0 // pred_check_branch
    %3 = sbr.rel (0) target = $region5
  $region4: #{tile.13} parent=0 // pred_region
    _
  $region5: #{tile.13} parent=0 // pred_fallthru
    _
  %v4 = vld [vmem:[%s0] ss:$0 sm:$0xff]
  %5 = vst [vmem:[%s1] sm:$0x3] %v4

// kernel: tile.0
$region0: #{tile.0}
  %s0 = inlined_call_operand.vmem [shape: f32[2,4], index: 0, kind: input, shape index: {}]
  %s1 = inlined_call_operand.vmem [shape: f32[8,1], index: 1, kind: output, shape index: {}]
  $region1: #{tile.0} parent=0
    #allocation0 [shape = 'u8[4096]{0}', space=vmem, size = 0x1000, scoped, tag = 'scoped mem for input reshape']
    %s3 = sshllo.u32 0, 2
    %v4 = vld [vmem:[%s0] sm:%s3]
    %5 = vst [vmem:[#allocation0] sm:%s3] %v4
    %v6 = vld [vmem:[#allocation0] sm:$0x3]
    %vm7 = vcmask 7168
    %8 = vst.msk [vmem:[%s1] ss:$4 sm:$0x3] %vm7, %v6
    %v9 = vld [vmem:[#allocation0] sm:$0x3]
    %10 = vrot.lane.b32.xlu0 %v9, 127
    %v11 = vpop.permute.xlu0 %10
    %vm12 = vcmask 7168
    %s13 = scalar_lea.vmem %s1, 1
    %14 = vst.msk [vmem:[%s13] ss:$4 sm:$0x3] %vm12, %v11
    %v15 = vld [vmem:[#allocation0] sm:$0x3]
    %16 = vrot.lane.b32.xlu0 %v15, 126
    %v17 = vpop.permute.xlu0 %16
    %vm18 = vcmask 7168
    %s19 = scalar_lea.vmem %s1, 2
    %20 = vst.msk [vmem:[%s19] ss:$4 sm:$0x3] %vm18, %v17
    %v21 = vld [vmem:[#allocation0] sm:$0x3]
    %22 = vrot.lane.b32.xlu0 %v21, 125
    %v23 = vpop.permute.xlu0 %22
    %vm24 = vcmask 7168
    %s25 = scalar_lea.vmem %s1, 3
    %26 = vst.msk [vmem:[%s25] ss:$4 sm:$0x3] %vm24, %v23

// kernel: prnn_backbone_pallas.1
$region0: #{prnn_backbone_pallas.1}
  #allocation0 [shape = 'u32[]', space=smem, size = 0x4, offset = 0x4, fixed_abs, tag = 'smem constant byte address 0x4 - core index']
  #allocation1 [shape = 'u32[144,128]{1,0:T(1,128)}', space=vmem, size = 0x12000, scoped, tag = 'internal scratch']
  %s0 = inlined_call_operand.vmem [shape: f32[8,16], index: 0, kind: input, shape index: {}]
  %s1 = inlined_call_operand.vmem [shape: f32[8,1], index: 1, kind: input, shape index: {}]
  %s2 = inlined_call_operand.vmem [shape: f32[8,1], index: 2, kind: input, shape index: {}]
  %s3 = inlined_call_operand.vmem [shape: f32[4,128], index: 3, kind: input, shape index: {}]
  %s4 = inlined_call_operand.vmem [shape: f32[128,128], index: 4, kind: input, shape index: {}]
  %s5 = inlined_call_operand.vmem [shape: f32[1,128], index: 5, kind: input, shape index: {}]
  %s6 = inlined_call_operand.vmem [shape: f32[128,128], index: 6, kind: input, shape index: {}]
  %s7 = inlined_call_operand.vmem [shape: f32[128,128], index: 7, kind: input, shape index: {}]
  %s8 = inlined_call_operand.vmem [shape: f32[1,128], index: 8, kind: input, shape index: {}]
  %s9 = inlined_call_operand.vmem [shape: f32[128,128], index: 9, kind: input, shape index: {}]
  %s10 = inlined_call_operand.vmem [shape: f32[1,128], index: 10, kind: input, shape index: {}]
  %s11 = inlined_call_operand.hbm [shape: f32[8,128], index: 11, kind: output, shape index: {}]
  %s12 = sld [smem:[#allocation0]]
  $region54: #{prnn_backbone_pallas.1} parent=0
    _
  %s14 = ssub.s32 1, %s12
  %s15 = scalar_select 0, %s14, %s12
  $region1: #{prnn_backbone_pallas.1} parent=0
    #allocation2 [shape = 'u8[4096]{0}', space=vmem, size = 0x1000, scoped, tag = 'output window, operand 0, single buffered']
    #allocation3 [shape = 's32[1]{0}', space=sflag, size = 0x4, scoped, tag = 'scoped memory for prnn_backbone_pallas.1']
    %16 = vsyncpa [#allocation3], 0
    // Predicated region
    $region2: #{prnn_backbone_pallas.1} parent=1 // pred_check
      _
    $region3: #{prnn_backbone_pallas.1} parent=1 // pred_check_branch
      %18 = sbr.rel (0) target = $region5
    $region4: #{prnn_backbone_pallas.1} parent=1 // pred_region
      _
    $region5: #{prnn_backbone_pallas.1} parent=1 // pred_fallthru
      _
    // Predicated region
    $region6: #{prnn_backbone_pallas.1} parent=1 // pred_check
      _
    $region7: #{prnn_backbone_pallas.1} parent=1 // pred_check_branch
      %20 = sbr.rel (0) target = $region9
    $region8: #{prnn_backbone_pallas.1} parent=1 // pred_region
      _
    $region9: #{prnn_backbone_pallas.1} parent=1 // pred_fallthru
      _
    // Predicated region
    $region10: #{prnn_backbone_pallas.1} parent=1 // pred_check
      _
    $region11: #{prnn_backbone_pallas.1} parent=1 // pred_check_branch
      %22 = sbr.rel (0) target = $region13
    $region12: #{prnn_backbone_pallas.1} parent=1 // pred_region
      _
    $region13: #{prnn_backbone_pallas.1} parent=1 // pred_fallthru
      _
    // Predicated region
    $region14: #{prnn_backbone_pallas.1} parent=1 // pred_check
      _
    $region15: #{prnn_backbone_pallas.1} parent=1 // pred_check_branch
      %24 = sbr.rel (0) target = $region17
    $region16: #{prnn_backbone_pallas.1} parent=1 // pred_region
      _
    $region17: #{prnn_backbone_pallas.1} parent=1 // pred_fallthru
      _
    // Predicated region
    $region18: #{prnn_backbone_pallas.1} parent=1 // pred_check
      _
    $region19: #{prnn_backbone_pallas.1} parent=1 // pred_check_branch
      %26 = sbr.rel (0) target = $region21
    $region20: #{prnn_backbone_pallas.1} parent=1 // pred_region
      _
    $region21: #{prnn_backbone_pallas.1} parent=1 // pred_fallthru
      _
    // Predicated region
    $region22: #{prnn_backbone_pallas.1} parent=1 // pred_check
      _
    $region23: #{prnn_backbone_pallas.1} parent=1 // pred_check_branch
      %28 = sbr.rel (0) target = $region25
    $region24: #{prnn_backbone_pallas.1} parent=1 // pred_region
      _
    $region25: #{prnn_backbone_pallas.1} parent=1 // pred_fallthru
      _
    // Predicated region
    $region26: #{prnn_backbone_pallas.1} parent=1 // pred_check
      _
    $region27: #{prnn_backbone_pallas.1} parent=1 // pred_check_branch
      %30 = sbr.rel (0) target = $region29
    $region28: #{prnn_backbone_pallas.1} parent=1 // pred_region
      _
    $region29: #{prnn_backbone_pallas.1} parent=1 // pred_fallthru
      _
    // Predicated region
    $region30: #{prnn_backbone_pallas.1} parent=1 // pred_check
      _
    $region31: #{prnn_backbone_pallas.1} parent=1 // pred_check_branch
      %32 = sbr.rel (0) target = $region33
    $region32: #{prnn_backbone_pallas.1} parent=1 // pred_region
      _
    $region33: #{prnn_backbone_pallas.1} parent=1 // pred_fallthru
      _
    // Predicated region
    $region34: #{prnn_backbone_pallas.1} parent=1 // pred_check
      _
    $region35: #{prnn_backbone_pallas.1} parent=1 // pred_check_branch
      %34 = sbr.rel (0) target = $region37
    $region36: #{prnn_backbone_pallas.1} parent=1 // pred_region
      _
    $region37: #{prnn_backbone_pallas.1} parent=1 // pred_fallthru
      _
    // Predicated region
    $region38: #{prnn_backbone_pallas.1} parent=1 // pred_check
      _
    $region39: #{prnn_backbone_pallas.1} parent=1 // pred_check_branch
      %36 = sbr.rel (0) target = $region41
    $region40: #{prnn_backbone_pallas.1} parent=1 // pred_region
      _
    $region41: #{prnn_backbone_pallas.1} parent=1 // pred_fallthru
      _
    // Predicated region
    $region42: #{prnn_backbone_pallas.1} parent=1 // pred_check
      _
    $region43: #{prnn_backbone_pallas.1} parent=1 // pred_check_branch
      %38 = sbr.rel (0) target = $region45
    $region44: #{prnn_backbone_pallas.1} parent=1 // pred_region
      _
    $region45: #{prnn_backbone_pallas.1} parent=1 // pred_fallthru
      _
    %v39 = vld [vmem:[%s0] sm:$0xff]
    %v40 = vld [vmem:[%s1] sm:$0xff]
    %v41 = vld [vmem:[%s2] sm:$0xff]
    %vm42 = vcmask 130048
    %v43 = vsel %vm42, %v39, 0.0
    %44 = vadd.xlane.f32.xlu0 %v43
    %v45 = vpop.xlane.xlu0 %44
    %v46 = vrcp.pop 16.0
    %v47 = vmul.f32 %v45, %v46
    %v48 = vsub.f32 %v39, %v47
    %v49 = vmul.f32 %v48, %v48
    %v50 = vsel %vm42, %v49, 0.0
    %51 = vadd.xlane.f32.xlu0 %v50
    %v52 = vpop.xlane.xlu0 %51
    %v53 = vmul.f32 %v52, %v46
    %v54 = vadd.f32 %v53, 1e-05
    %v55 = vrsqrt.pop %v54
    %v56 = vmul.f32 %v54, %v55
    %v57 = vmul.f32 %v40, %v55
    %59 = vset.pattern.permute.xlu0 0
    %60 = vperm.xlu0 %59, %v57
    %v61 = vpop.permute.xlu0 %60
    %v63 = vmul.f32 %v48, %v61
    %65 = vset.pattern.permute.xlu0 0
    %66 = vperm.xlu0 %65, %v41
    %v67 = vpop.permute.xlu0 %66
    %v69 = vadd.f32 %v63, %v67
    %v70 = vld [vmem:[%s3] sm:$0xf]
    %v71 = vld [vmem:[%s4] sm:$0xff]
    %v72 = vld [vmem:[%s4 + $0x8] sm:$0xff]
    %v73 = vld [vmem:[%s4 + $0x10] sm:$0xff]
    %v74 = vld [vmem:[%s4 + $0x18] sm:$0xff]
    %v75 = vld [vmem:[%s4 + $0x20] sm:$0xff]
    %v76 = vld [vmem:[%s4 + $0x28] sm:$0xff]
    %v77 = vld [vmem:[%s4 + $0x30] sm:$0xff]
    %v78 = vld [vmem:[%s4 + $0x38] sm:$0xff]
    %v79 = vld [vmem:[%s4 + $0x40] sm:$0xff]
    %v80 = vld [vmem:[%s4 + $0x48] sm:$0xff]
    %v81 = vld [vmem:[%s4 + $0x50] sm:$0xff]
    %v82 = vld [vmem:[%s4 + $0x58] sm:$0xff]
    %v83 = vld [vmem:[%s4 + $0x60] sm:$0xff]
    %v84 = vld [vmem:[%s4 + $0x68] sm:$0xff]
    %v85 = vld [vmem:[%s4 + $0x70] sm:$0xff]
    %v86 = vld [vmem:[%s4 + $0x78] sm:$0xff]
    %v87 = vld [vmem:[%s5] sm:$0x1]
    %v88 = vld [vmem:[%s6] sm:$0xff]
    %v89 = vld [vmem:[%s6 + $0x8] sm:$0xff]
    %v90 = vld [vmem:[%s6 + $0x10] sm:$0xff]
    %v91 = vld [vmem:[%s6 + $0x18] sm:$0xff]
    %v92 = vld [vmem:[%s6 + $0x20] sm:$0xff]
    %v93 = vld [vmem:[%s6 + $0x28] sm:$0xff]
    %v94 = vld [vmem:[%s6 + $0x30] sm:$0xff]
    %v95 = vld [vmem:[%s6 + $0x38] sm:$0xff]
    %v96 = vld [vmem:[%s6 + $0x40] sm:$0xff]
    %v97 = vld [vmem:[%s6 + $0x48] sm:$0xff]
    %v98 = vld [vmem:[%s6 + $0x50] sm:$0xff]
    %v99 = vld [vmem:[%s6 + $0x58] sm:$0xff]
    %v100 = vld [vmem:[%s6 + $0x60] sm:$0xff]
    %v101 = vld [vmem:[%s6 + $0x68] sm:$0xff]
    %v102 = vld [vmem:[%s6 + $0x70] sm:$0xff]
    %v103 = vld [vmem:[%s6 + $0x78] sm:$0xff]
    %v104 = vld [vmem:[%s7] sm:$0xff]
    %v105 = vld [vmem:[%s7 + $0x8] sm:$0xff]
    %v106 = vld [vmem:[%s7 + $0x10] sm:$0xff]
    %v107 = vld [vmem:[%s7 + $0x18] sm:$0xff]
    %v108 = vld [vmem:[%s7 + $0x20] sm:$0xff]
    %v109 = vld [vmem:[%s7 + $0x28] sm:$0xff]
    %v110 = vld [vmem:[%s7 + $0x30] sm:$0xff]
    %v111 = vld [vmem:[%s7 + $0x38] sm:$0xff]
    %v112 = vld [vmem:[%s7 + $0x40] sm:$0xff]
    %v113 = vld [vmem:[%s7 + $0x48] sm:$0xff]
    %v114 = vld [vmem:[%s7 + $0x50] sm:$0xff]
    %v115 = vld [vmem:[%s7 + $0x58] sm:$0xff]
    %v116 = vld [vmem:[%s7 + $0x60] sm:$0xff]
    %v117 = vld [vmem:[%s7 + $0x68] sm:$0xff]
    %v118 = vld [vmem:[%s7 + $0x70] sm:$0xff]
    %v119 = vld [vmem:[%s7 + $0x78] sm:$0xff]
    %v120 = vld [vmem:[%s8] sm:$0x1]
    %v122 = vlaneseq
    %v123 = vshrl.u32 %v122, 7
    %v124 = vsub.s32 0, %v123
    %v125 = vrot.slane %v87, %v124
    %vm127 = vcmask 31744
    %v129 = vsel %vm127, %v69, 0
    %vm131 = vcmask 1043456
    %v133 = vsel %vm131, %v70, 0
    %135 = vmatprep.subr.mxu0 0.0
    %136 = vmatpush1.msra.mxu0 %v133
    %137 = vmatprep.subr.mxu0 0.0
    %138 = vmatpush1.msra.mxu0 0.0
    %139 = vmatprep.subr.mxu0 0.0
    %140 = vmatpush1.msra.mxu0 0.0
    %141 = vmatprep.subr.mxu0 0.0
    %142 = vmatpush1.msra.mxu0 0.0
    %143 = vmatprep.subr.mxu0 0.0
    %144 = vmatpush1.msra.mxu0 0.0
    %145 = vmatprep.subr.mxu0 0.0
    %146 = vmatpush1.msra.mxu0 0.0
    %147 = vmatprep.subr.mxu0 0.0
    %148 = vmatpush1.msra.mxu0 0.0
    %149 = vmatprep.subr.mxu0 0.0
    %150 = vmatpush1.msra.mxu0 0.0
    %151 = vmatprep.subr.mxu0 0.0
    %152 = vmatpush1.msra.mxu0 0.0
    %153 = vmatprep.subr.mxu0 0.0
    %154 = vmatpush1.msra.mxu0 0.0
    %155 = vmatprep.subr.mxu0 0.0
    %156 = vmatpush1.msra.mxu0 0.0
    %157 = vmatprep.subr.mxu0 0.0
    %158 = vmatpush1.msra.mxu0 0.0
    %159 = vmatprep.subr.mxu0 0.0
    %160 = vmatpush1.msra.mxu0 0.0
    %161 = vmatprep.subr.mxu0 0.0
    %162 = vmatpush1.msra.mxu0 0.0
    %163 = vmatprep.subr.mxu0 0.0
    %164 = vmatpush1.msra.mxu0 0.0
    %165 = vmatprep.subr.mxu0 0.0
    %166 = vmatpush1.msra.mxu0 0.0
    %167 = vmatprep.subr.mxu0 0.0
    %168 = vmatpush1.msra.mxu0 0.0
    %169 = vmatprep.subr.mxu0 0.0
    %170 = vmatpush1.msra.mxu0 0.0
    %171 = vmatprep.subr.mxu0 0.0
    %172 = vmatpush1.msra.mxu0 0.0
    %173 = vmatprep.subr.mxu0 0.0
    %174 = vmatpush1.msra.mxu0 0.0
    %175 = vmatprep.subr.mxu0 0.0
    %176 = vmatpush1.msra.mxu0 0.0
    %177 = vmatprep.subr.mxu0 0.0
    %178 = vmatpush1.msra.mxu0 0.0
    %179 = vmatprep.subr.mxu0 0.0
    %180 = vmatpush1.msra.mxu0 0.0
    %181 = vmatprep.subr.mxu0 0.0
    %182 = vmatpush1.msra.mxu0 0.0
    %183 = vmatprep.subr.mxu0 0.0
    %184 = vmatpush1.msra.mxu0 0.0
    %185 = vmatprep.subr.mxu0 0.0
    %186 = vmatpush1.msra.mxu0 0.0
    %187 = vmatprep.subr.mxu0 0.0
    %188 = vmatpush1.msra.mxu0 0.0
    %189 = vmatprep.subr.mxu0 0.0
    %190 = vmatpush1.msra.mxu0 0.0
    %191 = vmatprep.subr.mxu0 0.0
    %192 = vmatpush1.msra.mxu0 0.0
    %193 = vmatprep.subr.mxu0 0.0
    %194 = vmatpush1.msra.mxu0 0.0
    %195 = vmatprep.subr.mxu0 0.0
    %196 = vmatpush1.msra.mxu0 0.0
    %197 = vmatprep.subr.mxu0 0.0
    %198 = vmatpush1.msra.mxu0 0.0
    %199 = vmatprep.mubr.f32.mxu0 0.0
    %200 = vmatmul.mubr.f32.gmra.mrb[0].mxu0 %v129
    %v201 = vpop.f32.mrb[0].mxu0
    %v202 = vadd.f32 %v125, %v201
    %v203 = vpop.f32.mrb[0].mxu0
    %204 = vdwg.mxu0
    %205 = vmatprep.subr.mxu0 0.0
    %206 = vmatpush1.msra.mxu0 %v71
    %207 = vmatprep.subr.mxu0 0.0
    %208 = vmatpush1.msra.mxu0 %v72
    %209 = vmatprep.subr.mxu0 0.0
    %210 = vmatpush1.msra.mxu0 %v73
    %211 = vmatprep.subr.mxu0 0.0
    %212 = vmatpush1.msra.mxu0 %v74
    %213 = vmatprep.subr.mxu0 0.0
    %214 = vmatpush1.msra.mxu0 %v75
    %215 = vmatprep.subr.mxu0 0.0
    %216 = vmatpush1.msra.mxu0 %v76
    %217 = vmatprep.subr.mxu0 0.0
    %218 = vmatpush1.msra.mxu0 %v77
    %219 = vmatprep.subr.mxu0 0.0
    %220 = vmatpush1.msra.mxu0 %v78
    %221 = vmatprep.subr.mxu0 0.0
    %222 = vmatpush1.msra.mxu0 %v79
    %223 = vmatprep.subr.mxu0 0.0
    %224 = vmatpush1.msra.mxu0 %v80
    %225 = vmatprep.subr.mxu0 0.0
    %226 = vmatpush1.msra.mxu0 %v81
    %227 = vmatprep.subr.mxu0 0.0
    %228 = vmatpush1.msra.mxu0 %v82
    %229 = vmatprep.subr.mxu0 0.0
    %230 = vmatpush1.msra.mxu0 %v83
    %231 = vmatprep.subr.mxu0 0.0
    %232 = vmatpush1.msra.mxu0 %v84
    %233 = vmatprep.subr.mxu0 0.0
    %234 = vmatpush1.msra.mxu0 %v85
    %235 = vmatprep.subr.mxu0 0.0
    %236 = vmatpush1.msra.mxu0 %v86
    %237 = vmatprep.subr.mxu0 0.0
    %238 = vmatpush1.msra.mxu0 0.0
    %239 = vmatprep.subr.mxu0 0.0
    %240 = vmatpush1.msra.mxu0 0.0
    %241 = vmatprep.subr.mxu0 0.0
    %242 = vmatpush1.msra.mxu0 0.0
    %243 = vmatprep.subr.mxu0 0.0
    %244 = vmatpush1.msra.mxu0 0.0
    %245 = vmatprep.subr.mxu0 0.0
    %246 = vmatpush1.msra.mxu0 0.0
    %247 = vmatprep.subr.mxu0 0.0
    %248 = vmatpush1.msra.mxu0 0.0
    %249 = vmatprep.subr.mxu0 0.0
    %250 = vmatpush1.msra.mxu0 0.0
    %251 = vmatprep.subr.mxu0 0.0
    %252 = vmatpush1.msra.mxu0 0.0
    %253 = vmatprep.subr.mxu0 0.0
    %254 = vmatpush1.msra.mxu0 0.0
    %255 = vmatprep.subr.mxu0 0.0
    %256 = vmatpush1.msra.mxu0 0.0
    %257 = vmatprep.subr.mxu0 0.0
    %258 = vmatpush1.msra.mxu0 0.0
    %259 = vmatprep.subr.mxu0 0.0
    %260 = vmatpush1.msra.mxu0 0.0
    %261 = vmatprep.subr.mxu0 0.0
    %262 = vmatpush1.msra.mxu0 0.0
    %263 = vmatprep.subr.mxu0 0.0
    %264 = vmatpush1.msra.mxu0 0.0
    %265 = vmatprep.subr.mxu0 0.0
    %266 = vmatpush1.msra.mxu0 0.0
    %267 = vmatprep.subr.mxu0 0.0
    %268 = vmatpush1.msra.mxu0 0.0
    %269 = vmatprep.mubr.f32.mxu0 0.0
    %270 = vmatmul.mubr.f32.gmra.mrb[0].mxu0 0.0
    %v271 = vpop.f32.mrb[0].mxu0
    %v272 = vadd.f32 0.0, %v271
    %v273 = vpop.f32.mrb[0].mxu0
    %274 = vdwg.mxu0
    %v275 = vadd.f32 %v202, %v272
    %v276 = vtanh.pop %v275
    %277 = vmatprep.subr.mxu0 0.0
    %278 = vmatpush1.msra.mxu0 %v104
    %279 = vmatprep.subr.mxu0 0.0
    %280 = vmatpush1.msra.mxu0 %v105
    %281 = vmatprep.subr.mxu0 0.0
    %282 = vmatpush1.msra.mxu0 %v106
    %283 = vmatprep.subr.mxu0 0.0
    %284 = vmatpush1.msra.mxu0 %v107
    %285 = vmatprep.subr.mxu0 0.0
    %286 = vmatpush1.msra.mxu0 %v108
    %287 = vmatprep.subr.mxu0 0.0
    %288 = vmatpush1.msra.mxu0 %v109
    %289 = vmatprep.subr.mxu0 0.0
    %290 = vmatpush1.msra.mxu0 %v110
    %291 = vmatprep.subr.mxu0 0.0
    %292 = vmatpush1.msra.mxu0 %v111
    %293 = vmatprep.subr.mxu0 0.0
    %294 = vmatpush1.msra.mxu0 %v112
    %295 = vmatprep.subr.mxu0 0.0
    %296 = vmatpush1.msra.mxu0 %v113
    %297 = vmatprep.subr.mxu0 0.0
    %298 = vmatpush1.msra.mxu0 %v114
    %299 = vmatprep.subr.mxu0 0.0
    %300 = vmatpush1.msra.mxu0 %v115
    %301 = vmatprep.subr.mxu0 0.0
    %302 = vmatpush1.msra.mxu0 %v116
    %303 = vmatprep.subr.mxu0 0.0
    %304 = vmatpush1.msra.mxu0 %v117
    %305 = vmatprep.subr.mxu0 0.0
    %306 = vmatpush1.msra.mxu0 %v118
    %307 = vmatprep.subr.mxu0 0.0
    %308 = vmatpush1.msra.mxu0 %v119
    %309 = vmatprep.subr.mxu0 0.0
    %310 = vmatpush1.msra.mxu0 0.0
    %311 = vmatprep.subr.mxu0 0.0
    %312 = vmatpush1.msra.mxu0 0.0
    %313 = vmatprep.subr.mxu0 0.0
    %314 = vmatpush1.msra.mxu0 0.0
    %315 = vmatprep.subr.mxu0 0.0
    %316 = vmatpush1.msra.mxu0 0.0
    %317 = vmatprep.subr.mxu0 0.0
    %318 = vmatpush1.msra.mxu0 0.0
    %319 = vmatprep.subr.mxu0 0.0
    %320 = vmatpush1.msra.mxu0 0.0
    %321 = vmatprep.subr.mxu0 0.0
    %322 = vmatpush1.msra.mxu0 0.0
    %323 = vmatprep.subr.mxu0 0.0
    %324 = vmatpush1.msra.mxu0 0.0
    %325 = vmatprep.subr.mxu0 0.0
    %326 = vmatpush1.msra.mxu0 0.0
    %327 = vmatprep.subr.mxu0 0.0
    %328 = vmatpush1.msra.mxu0 0.0
    %329 = vmatprep.subr.mxu0 0.0
    %330 = vmatpush1.msra.mxu0 0.0
    %331 = vmatprep.subr.mxu0 0.0
    %332 = vmatpush1.msra.mxu0 0.0
    %333 = vmatprep.subr.mxu0 0.0
    %334 = vmatpush1.msra.mxu0 0.0
    %335 = vmatprep.subr.mxu0 0.0
    %336 = vmatpush1.msra.mxu0 0.0
    %337 = vmatprep.subr.mxu0 0.0
    %338 = vmatpush1.msra.mxu0 0.0
    %339 = vmatprep.subr.mxu0 0.0
    %340 = vmatpush1.msra.mxu0 0.0
    %341 = vmatprep.mubr.f32.mxu0 0.0
    %342 = vmatmul.mubr.f32.gmra.mrb[0].mxu0 0.0
    %v343 = vpop.f32.mrb[0].mxu0
    %v344 = vadd.f32 0.0, %v343
    %v345 = vpop.f32.mrb[0].mxu0
    %346 = vdwg.mxu0
    %347 = vmatprep.subr.mxu0 0.0
    %348 = vmatpush1.msra.mxu0 %v88
    %349 = vmatprep.subr.mxu0 0.0
    %350 = vmatpush1.msra.mxu0 %v89
    %351 = vmatprep.subr.mxu0 0.0
    %352 = vmatpush1.msra.mxu0 %v90
    %353 = vmatprep.subr.mxu0 0.0
    %354 = vmatpush1.msra.mxu0 %v91
    %355 = vmatprep.subr.mxu0 0.0
    %356 = vmatpush1.msra.mxu0 %v92
    %357 = vmatprep.subr.mxu0 0.0
    %358 = vmatpush1.msra.mxu0 %v93
    %359 = vmatprep.subr.mxu0 0.0
    %360 = vmatpush1.msra.mxu0 %v94
    %361 = vmatprep.subr.mxu0 0.0
    %362 = vmatpush1.msra.mxu0 %v95
    %363 = vmatprep.subr.mxu0 0.0
    %364 = vmatpush1.msra.mxu0 %v96
    %365 = vmatprep.subr.mxu0 0.0
    %366 = vmatpush1.msra.mxu0 %v97
    %367 = vmatprep.subr.mxu0 0.0
    %368 = vmatpush1.msra.mxu0 %v98
    %369 = vmatprep.subr.mxu0 0.0
    %370 = vmatpush1.msra.mxu0 %v99
    %371 = vmatprep.subr.mxu0 0.0
    %372 = vmatpush1.msra.mxu0 %v100
    %373 = vmatprep.subr.mxu0 0.0
    %374 = vmatpush1.msra.mxu0 %v101
    %375 = vmatprep.subr.mxu0 0.0
    %376 = vmatpush1.msra.mxu0 %v102
    %377 = vmatprep.subr.mxu0 0.0
    %378 = vmatpush1.msra.mxu0 %v103
    %379 = vmatprep.subr.mxu0 0.0
    %380 = vmatpush1.msra.mxu0 0.0
    %381 = vmatprep.subr.mxu0 0.0
    %382 = vmatpush1.msra.mxu0 0.0
    %383 = vmatprep.subr.mxu0 0.0
    %384 = vmatpush1.msra.mxu0 0.0
    %385 = vmatprep.subr.mxu0 0.0
    %386 = vmatpush1.msra.mxu0 0.0
    %387 = vmatprep.subr.mxu0 0.0
    %388 = vmatpush1.msra.mxu0 0.0
    %389 = vmatprep.subr.mxu0 0.0
    %390 = vmatpush1.msra.mxu0 0.0
    %391 = vmatprep.subr.mxu0 0.0
    %392 = vmatpush1.msra.mxu0 0.0
    %393 = vmatprep.subr.mxu0 0.0
    %394 = vmatpush1.msra.mxu0 0.0
    %395 = vmatprep.subr.mxu0 0.0
    %396 = vmatpush1.msra.mxu0 0.0
    %397 = vmatprep.subr.mxu0 0.0
    %398 = vmatpush1.msra.mxu0 0.0
    %399 = vmatprep.subr.mxu0 0.0
    %400 = vmatpush1.msra.mxu0 0.0
    %401 = vmatprep.subr.mxu0 0.0
    %402 = vmatpush1.msra.mxu0 0.0
    %403 = vmatprep.subr.mxu0 0.0
    %404 = vmatpush1.msra.mxu0 0.0
    %405 = vmatprep.subr.mxu0 0.0
    %406 = vmatpush1.msra.mxu0 0.0
    %407 = vmatprep.subr.mxu0 0.0
    %408 = vmatpush1.msra.mxu0 0.0
    %409 = vmatprep.subr.mxu0 0.0
    %410 = vmatpush1.msra.mxu0 0.0
    %411 = vmatprep.mubr.f32.mxu0 0.0
    %412 = vmatmul.mubr.f32.gmra.mrb[0].mxu0 %v276
    %v413 = vpop.f32.mrb[0].mxu0
    %v414 = vadd.f32 %v344, %v413
    %v415 = vpop.f32.mrb[0].mxu0
    %416 = vdwg.mxu0
    %v418 = vlaneseq
    %v419 = vshrl.u32 %v418, 7
    %v420 = vsub.s32 0, %v419
    %v421 = vrot.slane %v120, %v420
    %v423 = vadd.f32 %v414, %v421
    %v424 = vtanh.pop %v423
    %425 = vrot.lane.b32.xlu0 %v69, 126
    %v426 = vpop.permute.xlu0 %425
    %v427 = vsel %vm127, %v426, 0
    %429 = vmatprep.subr.mxu0 0.0
    %430 = vmatpush1.msra.mxu0 %v133
    %431 = vmatprep.subr.mxu0 0.0
    %432 = vmatpush1.msra.mxu0 0.0
    %433 = vmatprep.subr.mxu0 0.0
    %434 = vmatpush1.msra.mxu0 0.0
    %435 = vmatprep.subr.mxu0 0.0
    %436 = vmatpush1.msra.mxu0 0.0
    %437 = vmatprep.subr.mxu0 0.0
    %438 = vmatpush1.msra.mxu0 0.0
    %439 = vmatprep.subr.mxu0 0.0
    %440 = vmatpush1.msra.mxu0 0.0
    %441 = vmatprep.subr.mxu0 0.0
    %442 = vmatpush1.msra.mxu0 0.0
    %443 = vmatprep.subr.mxu0 0.0
    %444 = vmatpush1.msra.mxu0 0.0
    %445 = vmatprep.subr.mxu0 0.0
    %446 = vmatpush1.msra.mxu0 0.0
    %447 = vmatprep.subr.mxu0 0.0
    %448 = vmatpush1.msra.mxu0 0.0
    %449 = vmatprep.subr.mxu0 0.0
    %450 = vmatpush1.msra.mxu0 0.0
    %451 = vmatprep.subr.mxu0 0.0
    %452 = vmatpush1.msra.mxu0 0.0
    %453 = vmatprep.subr.mxu0 0.0
    %454 = vmatpush1.msra.mxu0 0.0
    %455 = vmatprep.subr.mxu0 0.0
    %456 = vmatpush1.msra.mxu0 0.0
    %457 = vmatprep.subr.mxu0 0.0
    %458 = vmatpush1.msra.mxu0 0.0
    %459 = vmatprep.subr.mxu0 0.0
    %460 = vmatpush1.msra.mxu0 0.0
    %461 = vmatprep.subr.mxu0 0.0
    %462 = vmatpush1.msra.mxu0 0.0
    %463 = vmatprep.subr.mxu0 0.0
    %464 = vmatpush1.msra.mxu0 0.0
    %465 = vmatprep.subr.mxu0 0.0
    %466 = vmatpush1.msra.mxu0 0.0
    %467 = vmatprep.subr.mxu0 0.0
    %468 = vmatpush1.msra.mxu0 0.0
    %469 = vmatprep.subr.mxu0 0.0
    %470 = vmatpush1.msra.mxu0 0.0
    %471 = vmatprep.subr.mxu0 0.0
    %472 = vmatpush1.msra.mxu0 0.0
    %473 = vmatprep.subr.mxu0 0.0
    %474 = vmatpush1.msra.mxu0 0.0
    %475 = vmatprep.subr.mxu0 0.0
    %476 = vmatpush1.msra.mxu0 0.0
    %477 = vmatprep.subr.mxu0 0.0
    %478 = vmatpush1.msra.mxu0 0.0
    %479 = vmatprep.subr.mxu0 0.0
    %480 = vmatpush1.msra.mxu0 0.0
    %481 = vmatprep.subr.mxu0 0.0
    %482 = vmatpush1.msra.mxu0 0.0
    %483 = vmatprep.subr.mxu0 0.0
    %484 = vmatpush1.msra.mxu0 0.0
    %485 = vmatprep.subr.mxu0 0.0
    %486 = vmatpush1.msra.mxu0 0.0
    %487 = vmatprep.subr.mxu0 0.0
    %488 = vmatpush1.msra.mxu0 0.0
    %489 = vmatprep.subr.mxu0 0.0
    %490 = vmatpush1.msra.mxu0 0.0
    %491 = vmatprep.subr.mxu0 0.0
    %492 = vmatpush1.msra.mxu0 0.0
    %493 = vmatprep.mubr.f32.mxu0 0.0
    %494 = vmatmul.mubr.f32.gmra.mrb[0].mxu0 %v427
    %v495 = vpop.f32.mrb[0].mxu0
    %v496 = vadd.f32 %v125, %v495
    %v497 = vpop.f32.mrb[0].mxu0
    %498 = vdwg.mxu0
    %499 = vmatprep.subr.mxu0 0.0
    %500 = vmatpush1.msra.mxu0 %v71
    %501 = vmatprep.subr.mxu0 0.0
    %502 = vmatpush1.msra.mxu0 %v72
    %503 = vmatprep.subr.mxu0 0.0
    %504 = vmatpush1.msra.mxu0 %v73
    %505 = vmatprep.subr.mxu0 0.0
    %506 = vmatpush1.msra.mxu0 %v74
    %507 = vmatprep.subr.mxu0 0.0
    %508 = vmatpush1.msra.mxu0 %v75
    %509 = vmatprep.subr.mxu0 0.0
    %510 = vmatpush1.msra.mxu0 %v76
    %511 = vmatprep.subr.mxu0 0.0
    %512 = vmatpush1.msra.mxu0 %v77
    %513 = vmatprep.subr.mxu0 0.0
    %514 = vmatpush1.msra.mxu0 %v78
    %515 = vmatprep.subr.mxu0 0.0
    %516 = vmatpush1.msra.mxu0 %v79
    %517 = vmatprep.subr.mxu0 0.0
    %518 = vmatpush1.msra.mxu0 %v80
    %519 = vmatprep.subr.mxu0 0.0
    %520 = vmatpush1.msra.mxu0 %v81
    %521 = vmatprep.subr.mxu0 0.0
    %522 = vmatpush1.msra.mxu0 %v82
    %523 = vmatprep.subr.mxu0 0.0
    %524 = vmatpush1.msra.mxu0 %v83
    %525 = vmatprep.subr.mxu0 0.0
    %526 = vmatpush1.msra.mxu0 %v84
    %527 = vmatprep.subr.mxu0 0.0
    %528 = vmatpush1.msra.mxu0 %v85
    %529 = vmatprep.subr.mxu0 0.0
    %530 = vmatpush1.msra.mxu0 %v86
    %531 = vmatprep.subr.mxu0 0.0
    %532 = vmatpush1.msra.mxu0 0.0
    %533 = vmatprep.subr.mxu0 0.0
    %534 = vmatpush1.msra.mxu0 0.0
    %535 = vmatprep.subr.mxu0 0.0
    %536 = vmatpush1.msra.mxu0 0.0
    %537 = vmatprep.subr.mxu0 0.0
    %538 = vmatpush1.msra.mxu0 0.0
    %539 = vmatprep.subr.mxu0 0.0
    %540 = vmatpush1.msra.mxu0 0.0
    %541 = vmatprep.subr.mxu0 0.0
    %542 = vmatpush1.msra.mxu0 0.0
    %543 = vmatprep.subr.mxu0 0.0
    %544 = vmatpush1.msra.mxu0 0.0
    %545 = vmatprep.subr.mxu0 0.0
    %546 = vmatpush1.msra.mxu0 0.0
    %547 = vmatprep.subr.mxu0 0.0
    %548 = vmatpush1.msra.mxu0 0.0
    %549 = vmatprep.subr.mxu0 0.0
    %550 = vmatpush1.msra.mxu0 0.0
    %551 = vmatprep.subr.mxu0 0.0
    %552 = vmatpush1.msra.mxu0 0.0
    %553 = vmatprep.subr.mxu0 0.0
    %554 = vmatpush1.msra.mxu0 0.0
    %555 = vmatprep.subr.mxu0 0.0
    %556 = vmatpush1.msra.mxu0 0.0
    %557 = vmatprep.subr.mxu0 0.0
    %558 = vmatpush1.msra.mxu0 0.0
    %559 = vmatprep.subr.mxu0 0.0
    %560 = vmatpush1.msra.mxu0 0.0
    %561 = vmatprep.subr.mxu0 0.0
    %562 = vmatpush1.msra.mxu0 0.0
    %563 = vmatprep.mubr.f32.mxu0 0.0
    %564 = vmatmul.mubr.f32.gmra.mrb[0].mxu0 %v276
    %v565 = vpop.f32.mrb[0].mxu0
    %v566 = vadd.f32 0.0, %v565
    %v567 = vpop.f32.mrb[0].mxu0
    %568 = vdwg.mxu0
    %v569 = vadd.f32 %v496, %v566
    %v570 = vtanh.pop %v569
    %571 = vmatprep.subr.mxu0 0.0
    %572 = vmatpush1.msra.mxu0 %v104
    %573 = vmatprep.subr.mxu0 0.0
    %574 = vmatpush1.msra.mxu0 %v105
    %575 = vmatprep.subr.mxu0 0.0
    %576 = vmatpush1.msra.mxu0 %v106
    %577 = vmatprep.subr.mxu0 0.0
    %578 = vmatpush1.msra.mxu0 %v107
    %579 = vmatprep.subr.mxu0 0.0
    %580 = vmatpush1.msra.mxu0 %v108
    %581 = vmatprep.subr.mxu0 0.0
    %582 = vmatpush1.msra.mxu0 %v109
    %583 = vmatprep.subr.mxu0 0.0
    %584 = vmatpush1.msra.mxu0 %v110
    %585 = vmatprep.subr.mxu0 0.0
    %586 = vmatpush1.msra.mxu0 %v111
    %587 = vmatprep.subr.mxu0 0.0
    %588 = vmatpush1.msra.mxu0 %v112
    %589 = vmatprep.subr.mxu0 0.0
    %590 = vmatpush1.msra.mxu0 %v113
    %591 = vmatprep.subr.mxu0 0.0
    %592 = vmatpush1.msra.mxu0 %v114
    %593 = vmatprep.subr.mxu0 0.0
    %594 = vmatpush1.msra.mxu0 %v115
    %595 = vmatprep.subr.mxu0 0.0
    %596 = vmatpush1.msra.mxu0 %v116
    %597 = vmatprep.subr.mxu0 0.0
    %598 = vmatpush1.msra.mxu0 %v117
    %599 = vmatprep.subr.mxu0 0.0
    %600 = vmatpush1.msra.mxu0 %v118
    %601 = vmatprep.subr.mxu0 0.0
    %602 = vmatpush1.msra.mxu0 %v119
    %603 = vmatprep.subr.mxu0 0.0
    %604 = vmatpush1.msra.mxu0 0.0
    %605 = vmatprep.subr.mxu0 0.0
    %606 = vmatpush1.msra.mxu0 0.0
    %607 = vmatprep.subr.mxu0 0.0
    %608 = vmatpush1.msra.mxu0 0.0
    %609 = vmatprep.subr.mxu0 0.0
    %610 = vmatpush1.msra.mxu0 0.0
    %611 = vmatprep.subr.mxu0 0.0
    %612 = vmatpush1.msra.mxu0 0.0
    %613 = vmatprep.subr.mxu0 0.0
    %614 = vmatpush1.msra.mxu0 0.0
    %615 = vmatprep.subr.mxu0 0.0
    %616 = vmatpush1.msra.mxu0 0.0
    %617 = vmatprep.subr.mxu0 0.0
    %618 = vmatpush1.msra.mxu0 0.0
    %619 = vmatprep.subr.mxu0 0.0
    %620 = vmatpush1.msra.mxu0 0.0
    %621 = vmatprep.subr.mxu0 0.0
    %622 = vmatpush1.msra.mxu0 0.0
    %623 = vmatprep.subr.mxu0 0.0
    %624 = vmatpush1.msra.mxu0 0.0
    %625 = vmatprep.subr.mxu0 0.0
    %626 = vmatpush1.msra.mxu0 0.0
    %627 = vmatprep.subr.mxu0 0.0
    %628 = vmatpush1.msra.mxu0 0.0
    %629 = vmatprep.subr.mxu0 0.0
    %630 = vmatpush1.msra.mxu0 0.0
    %631 = vmatprep.subr.mxu0 0.0
    %632 = vmatpush1.msra.mxu0 0.0
    %633 = vmatprep.subr.mxu0 0.0
    %634 = vmatpush1.msra.mxu0 0.0
    %635 = vmatprep.mubr.f32.mxu0 0.0
    %636 = vmatmul.mubr.f32.gmra.mrb[0].mxu0 %v424
    %v637 = vpop.f32.mrb[0].mxu0
    %v638 = vadd.f32 0.0, %v637
    %v639 = vpop.f32.mrb[0].mxu0
    %640 = vdwg.mxu0
    %641 = vmatprep.subr.mxu0 0.0
    %642 = vmatpush1.msra.mxu0 %v88
    %643 = vmatprep.subr.mxu0 0.0
    %644 = vmatpush1.msra.mxu0 %v89
    %645 = vmatprep.subr.mxu0 0.0
    %646 = vmatpush1.msra.mxu0 %v90
    %647 = vmatprep.subr.mxu0 0.0
    %648 = vmatpush1.msra.mxu0 %v91
    %649 = vmatprep.subr.mxu0 0.0
    %650 = vmatpush1.msra.mxu0 %v92
    %651 = vmatprep.subr.mxu0 0.0
    %652 = vmatpush1.msra.mxu0 %v93
    %653 = vmatprep.subr.mxu0 0.0
    %654 = vmatpush1.msra.mxu0 %v94
    %655 = vmatprep.subr.mxu0 0.0
    %656 = vmatpush1.msra.mxu0 %v95
    %657 = vmatprep.subr.mxu0 0.0
    %658 = vmatpush1.msra.mxu0 %v96
    %659 = vmatprep.subr.mxu0 0.0
    %660 = vmatpush1.msra.mxu0 %v97
    %661 = vmatprep.subr.mxu0 0.0
    %662 = vmatpush1.msra.mxu0 %v98
    %663 = vmatprep.subr.mxu0 0.0
    %664 = vmatpush1.msra.mxu0 %v99
    %665 = vmatprep.subr.mxu0 0.0
    %666 = vmatpush1.msra.mxu0 %v100
    %667 = vmatprep.subr.mxu0 0.0
    %668 = vmatpush1.msra.mxu0 %v101
    %669 = vmatprep.subr.mxu0 0.0
    %670 = vmatpush1.msra.mxu0 %v102
    %671 = vmatprep.subr.mxu0 0.0
    %672 = vmatpush1.msra.mxu0 %v103
    %673 = vmatprep.subr.mxu0 0.0
    %674 = vmatpush1.msra.mxu0 0.0
    %675 = vmatprep.subr.mxu0 0.0
    %676 = vmatpush1.msra.mxu0 0.0
    %677 = vmatprep.subr.mxu0 0.0
    %678 = vmatpush1.msra.mxu0 0.0
    %679 = vmatprep.subr.mxu0 0.0
    %680 = vmatpush1.msra.mxu0 0.0
    %681 = vmatprep.subr.mxu0 0.0
    %682 = vmatpush1.msra.mxu0 0.0
    %683 = vmatprep.subr.mxu0 0.0
    %684 = vmatpush1.msra.mxu0 0.0
    %685 = vmatprep.subr.mxu0 0.0
    %686 = vmatpush1.msra.mxu0 0.0
    %687 = vmatprep.subr.mxu0 0.0
    %688 = vmatpush1.msra.mxu0 0.0
    %689 = vmatprep.subr.mxu0 0.0
    %690 = vmatpush1.msra.mxu0 0.0
    %691 = vmatprep.subr.mxu0 0.0
    %692 = vmatpush1.msra.mxu0 0.0
    %693 = vmatprep.subr.mxu0 0.0
    %694 = vmatpush1.msra.mxu0 0.0
    %695 = vmatprep.subr.mxu0 0.0
    %696 = vmatpush1.msra.mxu0 0.0
    %697 = vmatprep.subr.mxu0 0.0
    %698 = vmatpush1.msra.mxu0 0.0
    %699 = vmatprep.subr.mxu0 0.0
    %700 = vmatpush1.msra.mxu0 0.0
    %701 = vmatprep.subr.mxu0 0.0
    %702 = vmatpush1.msra.mxu0 0.0
    %703 = vmatprep.subr.mxu0 0.0
    %704 = vmatpush1.msra.mxu0 0.0
    %705 = vmatprep.mubr.f32.mxu0 0.0
    %706 = vmatmul.mubr.f32.gmra.mrb[0].mxu0 %v570
    %v707 = vpop.f32.mrb[0].mxu0
    %v708 = vadd.f32 %v638, %v707
    %v709 = vpop.f32.mrb[0].mxu0
    %710 = vdwg.mxu0
    %v711 = vadd.f32 %v708, %v421
    %v712 = vtanh.pop %v711
    %713 = vrot.lane.b32.xlu0 %v69, 124
    %v714 = vpop.permute.xlu0 %713
    %v715 = vsel %vm127, %v714, 0
    %717 = vmatprep.subr.mxu0 0.0
    %718 = vmatpush1.msra.mxu0 %v133
    %719 = vmatprep.subr.mxu0 0.0
    %720 = vmatpush1.msra.mxu0 0.0
    %721 = vmatprep.subr.mxu0 0.0
    %722 = vmatpush1.msra.mxu0 0.0
    %723 = vmatprep.subr.mxu0 0.0
    %724 = vmatpush1.msra.mxu0 0.0
    %725 = vmatprep.subr.mxu0 0.0
    %726 = vmatpush1.msra.mxu0 0.0
    %727 = vmatprep.subr.mxu0 0.0
    %728 = vmatpush1.msra.mxu0 0.0
    %729 = vmatprep.subr.mxu0 0.0
    %730 = vmatpush1.msra.mxu0 0.0
    %731 = vmatprep.subr.mxu0 0.0
    %732 = vmatpush1.msra.mxu0 0.0
    %733 = vmatprep.subr.mxu0 0.0
    %734 = vmatpush1.msra.mxu0 0.0
    %735 = vmatprep.subr.mxu0 0.0
    %736 = vmatpush1.msra.mxu0 0.0
    %737 = vmatprep.subr.mxu0 0.0
    %738 = vmatpush1.msra.mxu0 0.0
    %739 = vmatprep.subr.mxu0 0.0
    %740 = vmatpush1.msra.mxu0 0.0
    %741 = vmatprep.subr.mxu0 0.0
    %742 = vmatpush1.msra.mxu0 0.0
    %743 = vmatprep.subr.mxu0 0.0
    %744 = vmatpush1.msra.mxu0 0.0
    %745 = vmatprep.subr.mxu0 0.0
    %746 = vmatpush1.msra.mxu0 0.0
    %747 = vmatprep.subr.mxu0 0.0
    %748 = vmatpush1.msra.mxu0 0.0
    %749 = vmatprep.subr.mxu0 0.0
    %750 = vmatpush1.msra.mxu0 0.0
    %751 = vmatprep.subr.mxu0 0.0
    %752 = vmatpush1.msra.mxu0 0.0
    %753 = vmatprep.subr.mxu0 0.0
    %754 = vmatpush1.msra.mxu0 0.0
    %755 = vmatprep.subr.mxu0 0.0
    %756 = vmatpush1.msra.mxu0 0.0
    %757 = vmatprep.subr.mxu0 0.0
    %758 = vmatpush1.msra.mxu0 0.0
    %759 = vmatprep.subr.mxu0 0.0
    %760 = vmatpush1.msra.mxu0 0.0
    %761 = vmatprep.subr.mxu0 0.0
    %762 = vmatpush1.msra.mxu0 0.0
    %763 = vmatprep.subr.mxu0 0.0
    %764 = vmatpush1.msra.mxu0 0.0
    %765 = vmatprep.subr.mxu0 0.0
    %766 = vmatpush1.msra.mxu0 0.0
    %767 = vmatprep.subr.mxu0 0.0
    %768 = vmatpush1.msra.mxu0 0.0
    %769 = vmatprep.subr.mxu0 0.0
    %770 = vmatpush1.msra.mxu0 0.0
    %771 = vmatprep.subr.mxu0 0.0
    %772 = vmatpush1.msra.mxu0 0.0
    %773 = vmatprep.subr.mxu0 0.0
    %774 = vmatpush1.msra.mxu0 0.0
    %775 = vmatprep.subr.mxu0 0.0
    %776 = vmatpush1.msra.mxu0 0.0
    %777 = vmatprep.subr.mxu0 0.0
    %778 = vmatpush1.msra.mxu0 0.0
    %779 = vmatprep.subr.mxu0 0.0
    %780 = vmatpush1.msra.mxu0 0.0
    %781 = vmatprep.mubr.f32.mxu0 0.0
    %782 = vmatmul.mubr.f32.gmra.mrb[0].mxu0 %v715
    %v783 = vpop.f32.mrb[0].mxu0
    %v784 = vadd.f32 %v125, %v783
    %v785 = vpop.f32.mrb[0].mxu0
    %786 = vdwg.mxu0
    %787 = vmatprep.subr.mxu0 0.0
    %788 = vmatpush1.msra.mxu0 %v71
    %789 = vmatprep.subr.mxu0 0.0
    %790 = vmatpush1.msra.mxu0 %v72
    %791 = vmatprep.subr.mxu0 0.0
    %792 = vmatpush1.msra.mxu0 %v73
    %793 = vmatprep.subr.mxu0 0.0
    %794 = vmatpush1.msra.mxu0 %v74
    %795 = vmatprep.subr.mxu0 0.0
    %796 = vmatpush1.msra.mxu0 %v75
    %797 = vmatprep.subr.mxu0 0.0
    %798 = vmatpush1.msra.mxu0 %v76
    %799 = vmatprep.subr.mxu0 0.0
    %800 = vmatpush1.msra.mxu0 %v77
    %801 = vmatprep.subr.mxu0 0.0
    %802 = vmatpush1.msra.mxu0 %v78
    %803 = vmatprep.subr.mxu0 0.0
    %804 = vmatpush1.msra.mxu0 %v79
    %805 = vmatprep.subr.mxu0 0.0
    %806 = vmatpush1.msra.mxu0 %v80
    %807 = vmatprep.subr.mxu0 0.0
    %808 = vmatpush1.msra.mxu0 %v81
    %809 = vmatprep.subr.mxu0 0.0
    %810 = vmatpush1.msra.mxu0 %v82
    %811 = vmatprep.subr.mxu0 0.0
    %812 = vmatpush1.msra.mxu0 %v83
    %813 = vmatprep.subr.mxu0 0.0
    %814 = vmatpush1.msra.mxu0 %v84
    %815 = vmatprep.subr.mxu0 0.0
    %816 = vmatpush1.msra.mxu0 %v85
    %817 = vmatprep.subr.mxu0 0.0
    %818 = vmatpush1.msra.mxu0 %v86
    %819 = vmatprep.subr.mxu0 0.0
    %820 = vmatpush1.msra.mxu0 0.0
    %821 = vmatprep.subr.mxu0 0.0
    %822 = vmatpush1.msra.mxu0 0.0
    %823 = vmatprep.subr.mxu0 0.0
    %824 = vmatpush1.msra.mxu0 0.0
    %825 = vmatprep.subr.mxu0 0.0
    %826 = vmatpush1.msra.mxu0 0.0
    %827 = vmatprep.subr.mxu0 0.0
    %828 = vmatpush1.msra.mxu0 0.0
    %829 = vmatprep.subr.mxu0 0.0
    %830 = vmatpush1.msra.mxu0 0.0
    %831 = vmatprep.subr.mxu0 0.0
    %832 = vmatpush1.msra.mxu0 0.0
    %833 = vmatprep.subr.mxu0 0.0
    %834 = vmatpush1.msra.mxu0 0.0
    %835 = vmatprep.subr.mxu0 0.0
    %836 = vmatpush1.msra.mxu0 0.0
    %837 = vmatprep.subr.mxu0 0.0
    %838 = vmatpush1.msra.mxu0 0.0
    %839 = vmatprep.subr.mxu0 0.0
    %840 = vmatpush1.msra.mxu0 0.0
    %841 = vmatprep.subr.mxu0 0.0
    %842 = vmatpush1.msra.mxu0 0.0
    %843 = vmatprep.subr.mxu0 0.0
    %844 = vmatpush1.msra.mxu0 0.0
    %845 = vmatprep.subr.mxu0 0.0
    %846 = vmatpush1.msra.mxu0 0.0
    %847 = vmatprep.subr.mxu0 0.0
    %848 = vmatpush1.msra.mxu0 0.0
    %849 = vmatprep.subr.mxu0 0.0
    %850 = vmatpush1.msra.mxu0 0.0
    %851 = vmatprep.mubr.f32.mxu0 0.0
    %852 = vmatmul.mubr.f32.gmra.mrb[0].mxu0 %v570
    %v853 = vpop.f32.mrb[0].mxu0
    %v854 = vadd.f32 0.0, %v853
    %v855 = vpop.f32.mrb[0].mxu0
    %856 = vdwg.mxu0
    %v857 = vadd.f32 %v784, %v854
    %v858 = vtanh.pop %v857
    %859 = vmatprep.subr.mxu0 0.0
    %860 = vmatpush1.msra.mxu0 %v104
    %861 = vmatprep.subr.mxu0 0.0
    %862 = vmatpush1.msra.mxu0 %v105
    %863 = vmatprep.subr.mxu0 0.0
    %864 = vmatpush1.msra.mxu0 %v106
    %865 = vmatprep.subr.mxu0 0.0
    %866 = vmatpush1.msra.mxu0 %v107
    %867 = vmatprep.subr.mxu0 0.0
    %868 = vmatpush1.msra.mxu0 %v108
    %869 = vmatprep.subr.mxu0 0.0
    %870 = vmatpush1.msra.mxu0 %v109
    %871 = vmatprep.subr.mxu0 0.0
    %872 = vmatpush1.msra.mxu0 %v110
    %873 = vmatprep.subr.mxu0 0.0
    %874 = vmatpush1.msra.mxu0 %v111
    %875 = vmatprep.subr.mxu0 0.0
    %876 = vmatpush1.msra.mxu0 %v112
    %877 = vmatprep.subr.mxu0 0.0
    %878 = vmatpush1.msra.mxu0 %v113
    %879 = vmatprep.subr.mxu0 0.0
    %880 = vmatpush1.msra.mxu0 %v114
    %881 = vmatprep.subr.mxu0 0.0
    %882 = vmatpush1.msra.mxu0 %v115
    %883 = vmatprep.subr.mxu0 0.0
    %884 = vmatpush1.msra.mxu0 %v116
    %885 = vmatprep.subr.mxu0 0.0
    %886 = vmatpush1.msra.mxu0 %v117
    %887 = vmatprep.subr.mxu0 0.0
    %888 = vmatpush1.msra.mxu0 %v118
    %889 = vmatprep.subr.mxu0 0.0
    %890 = vmatpush1.msra.mxu0 %v119
    %891 = vmatprep.subr.mxu0 0.0
    %892 = vmatpush1.msra.mxu0 0.0
    %893 = vmatprep.subr.mxu0 0.0
    %894 = vmatpush1.msra.mxu0 0.0
    %895 = vmatprep.subr.mxu0 0.0
    %896 = vmatpush1.msra.mxu0 0.0
    %897 = vmatprep.subr.mxu0 0.0
    %898 = vmatpush1.msra.mxu0 0.0
    %899 = vmatprep.subr.mxu0 0.0
    %900 = vmatpush1.msra.mxu0 0.0
    %901 = vmatprep.subr.mxu0 0.0
    %902 = vmatpush1.msra.mxu0 0.0
    %903 = vmatprep.subr.mxu0 0.0
    %904 = vmatpush1.msra.mxu0 0.0
    %905 = vmatprep.subr.mxu0 0.0
    %906 = vmatpush1.msra.mxu0 0.0
    %907 = vmatprep.subr.mxu0 0.0
    %908 = vmatpush1.msra.mxu0 0.0
    %909 = vmatprep.subr.mxu0 0.0
    %910 = vmatpush1.msra.mxu0 0.0
    %911 = vmatprep.subr.mxu0 0.0
    %912 = vmatpush1.msra.mxu0 0.0
    %913 = vmatprep.subr.mxu0 0.0
    %914 = vmatpush1.msra.mxu0 0.0
    %915 = vmatprep.subr.mxu0 0.0
    %916 = vmatpush1.msra.mxu0 0.0
    %917 = vmatprep.subr.mxu0 0.0
    %918 = vmatpush1.msra.mxu0 0.0
    %919 = vmatprep.subr.mxu0 0.0
    %920 = vmatpush1.msra.mxu0 0.0
    %921 = vmatprep.subr.mxu0 0.0
    %922 = vmatpush1.msra.mxu0 0.0
    %923 = vmatprep.mubr.f32.mxu0 0.0
    %924 = vmatmul.mubr.f32.gmra.mrb[0].mxu0 %v712
    %v925 = vpop.f32.mrb[0].mxu0
    %v926 = vadd.f32 0.0, %v925
    %v927 = vpop.f32.mrb[0].mxu0
    %928 = vdwg.mxu0
    %929 = vmatprep.subr.mxu0 0.0
    %930 = vmatpush1.msra.mxu0 %v88
    %931 = vmatprep.subr.mxu0 0.0
    %932 = vmatpush1.msra.mxu0 %v89
    %933 = vmatprep.subr.mxu0 0.0
    %934 = vmatpush1.msra.mxu0 %v90
    %935 = vmatprep.subr.mxu0 0.0
    %936 = vmatpush1.msra.mxu0 %v91
    %937 = vmatprep.subr.mxu0 0.0
    %938 = vmatpush1.msra.mxu0 %v92
    %939 = vmatprep.subr.mxu0 0.0
    %940 = vmatpush1.msra.mxu0 %v93
    %941 = vmatprep.subr.mxu0 0.0
    %942 = vmatpush1.msra.mxu0 %v94
    %943 = vmatprep.subr.mxu0 0.0
    %944 = vmatpush1.msra.mxu0 %v95
    %945 = vmatprep.subr.mxu0 0.0
    %946 = vmatpush1.msra.mxu0 %v96
    %947 = vmatprep.subr.mxu0 0.0
    %948 = vmatpush1.msra.mxu0 %v97
    %949 = vmatprep.subr.mxu0 0.0
    %950 = vmatpush1.msra.mxu0 %v98
    %951 = vmatprep.subr.mxu0 0.0
    %952 = vmatpush1.msra.mxu0 %v99
    %953 = vmatprep.subr.mxu0 0.0
    %954 = vmatpush1.msra.mxu0 %v100
    %955 = vmatprep.subr.mxu0 0.0
    %956 = vmatpush1.msra.mxu0 %v101
    %957 = vmatprep.subr.mxu0 0.0
    %958 = vmatpush1.msra.mxu0 %v102
    %959 = vmatprep.subr.mxu0 0.0
    %960 = vmatpush1.msra.mxu0 %v103
    %961 = vmatprep.subr.mxu0 0.0
    %962 = vmatpush1.msra.mxu0 0.0
    %963 = vmatprep.subr.mxu0 0.0
    %964 = vmatpush1.msra.mxu0 0.0
    %965 = vmatprep.subr.mxu0 0.0
    %966 = vmatpush1.msra.mxu0 0.0
    %967 = vmatprep.subr.mxu0 0.0
    %968 = vmatpush1.msra.mxu0 0.0
    %969 = vmatprep.subr.mxu0 0.0
    %970 = vmatpush1.msra.mxu0 0.0
    %971 = vmatprep.subr.mxu0 0.0
    %972 = vmatpush1.msra.mxu0 0.0
    %973 = vmatprep.subr.mxu0 0.0
    %974 = vmatpush1.msra.mxu0 0.0
    %975 = vmatprep.subr.mxu0 0.0
    %976 = vmatpush1.msra.mxu0 0.0
    %977 = vmatprep.subr.mxu0 0.0
    %978 = vmatpush1.msra.mxu0 0.0
    %979 = vmatprep.subr.mxu0 0.0
    %980 = vmatpush1.msra.mxu0 0.0
    %981 = vmatprep.subr.mxu0 0.0
    %982 = vmatpush1.msra.mxu0 0.0
    %983 = vmatprep.subr.mxu0 0.0
    %984 = vmatpush1.msra.mxu0 0.0
    %985 = vmatprep.subr.mxu0 0.0
    %986 = vmatpush1.msra.mxu0 0.0
    %987 = vmatprep.subr.mxu0 0.0
    %988 = vmatpush1.msra.mxu0 0.0
    %989 = vmatprep.subr.mxu0 0.0
    %990 = vmatpush1.msra.mxu0 0.0
    %991 = vmatprep.subr.mxu0 0.0
    %992 = vmatpush1.msra.mxu0 0.0
    %993 = vmatprep.mubr.f32.mxu0 0.0
    %994 = vmatmul.mubr.f32.gmra.mrb[0].mxu0 %v858
    %v995 = vpop.f32.mrb[0].mxu0
    %v996 = vadd.f32 %v926, %v995
    %v997 = vpop.f32.mrb[0].mxu0
    %998 = vdwg.mxu0
    %v999 = vadd.f32 %v996, %v421
    %v1000 = vtanh.pop %v999
    %1001 = vrot.lane.b32.xlu0 %v69, 122
    %v1002 = vpop.permute.xlu0 %1001
    %v1003 = vsel %vm127, %v1002, 0
    %1005 = vmatprep.subr.mxu0 0.0
    %1006 = vmatpush1.msra.mxu0 %v133
    %1007 = vmatprep.subr.mxu0 0.0
    %1008 = vmatpush1.msra.mxu0 0.0
    %1009 = vmatprep.subr.mxu0 0.0
    %1010 = vmatpush1.msra.mxu0 0.0
    %1011 = vmatprep.subr.mxu0 0.0
    %1012 = vmatpush1.msra.mxu0 0.0
    %1013 = vmatprep.subr.mxu0 0.0
    %1014 = vmatpush1.msra.mxu0 0.0
    %1015 = vmatprep.subr.mxu0 0.0
    %1016 = vmatpush1.msra.mxu0 0.0
    %1017 = vmatprep.subr.mxu0 0.0
    %1018 = vmatpush1.msra.mxu0 0.0
    %1019 = vmatprep.subr.mxu0 0.0
    %1020 = vmatpush1.msra.mxu0 0.0
    %1021 = vmatprep.subr.mxu0 0.0
    %1022 = vmatpush1.msra.mxu0 0.0
    %1023 = vmatprep.subr.mxu0 0.0
    %1024 = vmatpush1.msra.mxu0 0.0
    %1025 = vmatprep.subr.mxu0 0.0
    %1026 = vmatpush1.msra.mxu0 0.0
    %1027 = vmatprep.subr.mxu0 0.0
    %1028 = vmatpush1.msra.mxu0 0.0
    %1029 = vmatprep.subr.mxu0 0.0
    %1030 = vmatpush1.msra.mxu0 0.0
    %1031 = vmatprep.subr.mxu0 0.0
    %1032 = vmatpush1.msra.mxu0 0.0
    %1033 = vmatprep.subr.mxu0 0.0
    %1034 = vmatpush1.msra.mxu0 0.0
    %1035 = vmatprep.subr.mxu0 0.0
    %1036 = vmatpush1.msra.mxu0 0.0
    %1037 = vmatprep.subr.mxu0 0.0
    %1038 = vmatpush1.msra.mxu0 0.0
    %1039 = vmatprep.subr.mxu0 0.0
    %1040 = vmatpush1.msra.mxu0 0.0
    %1041 = vmatprep.subr.mxu0 0.0
    %1042 = vmatpush1.msra.mxu0 0.0
    %1043 = vmatprep.subr.mxu0 0.0
    %1044 = vmatpush1.msra.mxu0 0.0
    %1045 = vmatprep.subr.mxu0 0.0
    %1046 = vmatpush1.msra.mxu0 0.0
    %1047 = vmatprep.subr.mxu0 0.0
    %1048 = vmatpush1.msra.mxu0 0.0
    %1049 = vmatprep.subr.mxu0 0.0
    %1050 = vmatpush1.msra.mxu0 0.0
    %1051 = vmatprep.subr.mxu0 0.0
    %1052 = vmatpush1.msra.mxu0 0.0
    %1053 = vmatprep.subr.mxu0 0.0
    %1054 = vmatpush1.msra.mxu0 0.0
    %1055 = vmatprep.subr.mxu0 0.0
    %1056 = vmatpush1.msra.mxu0 0.0
    %1057 = vmatprep.subr.mxu0 0.0
    %1058 = vmatpush1.msra.mxu0 0.0
    %1059 = vmatprep.subr.mxu0 0.0
    %1060 = vmatpush1.msra.mxu0 0.0
    %1061 = vmatprep.subr.mxu0 0.0
    %1062 = vmatpush1.msra.mxu0 0.0
    %1063 = vmatprep.subr.mxu0 0.0
    %1064 = vmatpush1.msra.mxu0 0.0
    %1065 = vmatprep.subr.mxu0 0.0
    %1066 = vmatpush1.msra.mxu0 0.0
    %1067 = vmatprep.subr.mxu0 0.0
    %1068 = vmatpush1.msra.mxu0 0.0
    %1069 = vmatprep.mubr.f32.mxu0 0.0
    %1070 = vmatmul.mubr.f32.gmra.mrb[0].mxu0 %v1003
    %v1071 = vpop.f32.mrb[0].mxu0
    %v1072 = vadd.f32 %v125, %v1071
    %v1073 = vpop.f32.mrb[0].mxu0
    %1074 = vdwg.mxu0
    %1075 = vmatprep.subr.mxu0 0.0
    %1076 = vmatpush1.msra.mxu0 %v71
    %1077 = vmatprep.subr.mxu0 0.0
    %1078 = vmatpush1.msra.mxu0 %v72
    %1079 = vmatprep.subr.mxu0 0.0
    %1080 = vmatpush1.msra.mxu0 %v73
    %1081 = vmatprep.subr.mxu0 0.0
    %1082 = vmatpush1.msra.mxu0 %v74
    %1083 = vmatprep.subr.mxu0 0.0
    %1084 = vmatpush1.msra.mxu0 %v75
    %1085 = vmatprep.subr.mxu0 0.0
    %1086 = vmatpush1.msra.mxu0 %v76
    %1087 = vmatprep.subr.mxu0 0.0
    %1088 = vmatpush1.msra.mxu0 %v77
    %1089 = vmatprep.subr.mxu0 0.0
    %1090 = vmatpush1.msra.mxu0 %v78
    %1091 = vmatprep.subr.mxu0 0.0
    %1092 = vmatpush1.msra.mxu0 %v79
    %1093 = vmatprep.subr.mxu0 0.0
    %1094 = vmatpush1.msra.mxu0 %v80
    %1095 = vmatprep.subr.mxu0 0.0
    %1096 = vmatpush1.msra.mxu0 %v81
    %1097 = vmatprep.subr.mxu0 0.0
    %1098 = vmatpush1.msra.mxu0 %v82
    %1099 = vmatprep.subr.mxu0 0.0
    %1100 = vmatpush1.msra.mxu0 %v83
    %1101 = vmatprep.subr.mxu0 0.0
    %1102 = vmatpush1.msra.mxu0 %v84
    %1103 = vmatprep.subr.mxu0 0.0
    %1104 = vmatpush1.msra.mxu0 %v85
    %1105 = vmatprep.subr.mxu0 0.0
    %1106 = vmatpush1.msra.mxu0 %v86
    %1107 = vmatprep.subr.mxu0 0.0
    %1108 = vmatpush1.msra.mxu0 0.0
    %1109 = vmatprep.subr.mxu0 0.0
    %1110 = vmatpush1.msra.mxu0 0.0
    %1111 = vmatprep.subr.mxu0 0.0
    %1112 = vmatpush1.msra.mxu0 0.0
    %1113 = vmatprep.subr.mxu0 0.0
    %1114 = vmatpush1.msra.mxu0 0.0
    %1115 = vmatprep.subr.mxu0 0.0
    %1116 = vmatpush1.msra.mxu0 0.0
    %1117 = vmatprep.subr.mxu0 0.0
    %1118 = vmatpush1.msra.mxu0 0.0
    %1119 = vmatprep.subr.mxu0 0.0
    %1120 = vmatpush1.msra.mxu0 0.0
    %1121 = vmatprep.subr.mxu0 0.0
    %1122 = vmatpush1.msra.mxu0 0.0
    %1123 = vmatprep.subr.mxu0 0.0
    %1124 = vmatpush1.msra.mxu0 0.0
    %1125 = vmatprep.subr.mxu0 0.0
    %1126 = vmatpush1.msra.mxu0 0.0
    %1127 = vmatprep.subr.mxu0 0.0
    %1128 = vmatpush1.msra.mxu0 0.0
    %1129 = vmatprep.subr.mxu0 0.0
    %1130 = vmatpush1.msra.mxu0 0.0
    %1131 = vmatprep.subr.mxu0 0.0
    %1132 = vmatpush1.msra.mxu0 0.0
    %1133 = vmatprep.subr.mxu0 0.0
    %1134 = vmatpush1.msra.mxu0 0.0
    %1135 = vmatprep.subr.mxu0 0.0
    %1136 = vmatpush1.msra.mxu0 0.0
    %1137 = vmatprep.subr.mxu0 0.0
    %1138 = vmatpush1.msra.mxu0 0.0
    %1139 = vmatprep.mubr.f32.mxu0 0.0
    %1140 = vmatmul.mubr.f32.gmra.mrb[0].mxu0 %v858
    %v1141 = vpop.f32.mrb[0].mxu0
    %v1142 = vadd.f32 0.0, %v1141
    %v1143 = vpop.f32.mrb[0].mxu0
    %1144 = vdwg.mxu0
    %v1145 = vadd.f32 %v1072, %v1142
    %v1146 = vtanh.pop %v1145
    %1147 = vmatprep.subr.mxu0 0.0
    %1148 = vmatpush1.msra.mxu0 %v104
    %1149 = vmatprep.subr.mxu0 0.0
    %1150 = vmatpush1.msra.mxu0 %v105
    %1151 = vmatprep.subr.mxu0 0.0
    %1152 = vmatpush1.msra.mxu0 %v106
    %1153 = vmatprep.subr.mxu0 0.0
    %1154 = vmatpush1.msra.mxu0 %v107
    %1155 = vmatprep.subr.mxu0 0.0
    %1156 = vmatpush1.msra.mxu0 %v108
    %1157 = vmatprep.subr.mxu0 0.0
    %1158 = vmatpush1.msra.mxu0 %v109
    %1159 = vmatprep.subr.mxu0 0.0
    %1160 = vmatpush1.msra.mxu0 %v110
    %1161 = vmatprep.subr.mxu0 0.0
    %1162 = vmatpush1.msra.mxu0 %v111
    %1163 = vmatprep.subr.mxu0 0.0
    %1164 = vmatpush1.msra.mxu0 %v112
    %1165 = vmatprep.subr.mxu0 0.0
    %1166 = vmatpush1.msra.mxu0 %v113
    %1167 = vmatprep.subr.mxu0 0.0
    %1168 = vmatpush1.msra.mxu0 %v114
    %1169 = vmatprep.subr.mxu0 0.0
    %1170 = vmatpush1.msra.mxu0 %v115
    %1171 = vmatprep.subr.mxu0 0.0
    %1172 = vmatpush1.msra.mxu0 %v116
    %1173 = vmatprep.subr.mxu0 0.0
    %1174 = vmatpush1.msra.mxu0 %v117
    %1175 = vmatprep.subr.mxu0 0.0
    %1176 = vmatpush1.msra.mxu0 %v118
    %1177 = vmatprep.subr.mxu0 0.0
    %1178 = vmatpush1.msra.mxu0 %v119
    %1179 = vmatprep.subr.mxu0 0.0
    %1180 = vmatpush1.msra.mxu0 0.0
    %1181 = vmatprep.subr.mxu0 0.0
    %1182 = vmatpush1.msra.mxu0 0.0
    %1183 = vmatprep.subr.mxu0 0.0
    %1184 = vmatpush1.msra.mxu0 0.0
    %1185 = vmatprep.subr.mxu0 0.0
    %1186 = vmatpush1.msra.mxu0 0.0
    %1187 = vmatprep.subr.mxu0 0.0
    %1188 = vmatpush1.msra.mxu0 0.0
    %1189 = vmatprep.subr.mxu0 0.0
    %1190 = vmatpush1.msra.mxu0 0.0
    %1191 = vmatprep.subr.mxu0 0.0
    %1192 = vmatpush1.msra.mxu0 0.0
    %1193 = vmatprep.subr.mxu0 0.0
    %1194 = vmatpush1.msra.mxu0 0.0
    %1195 = vmatprep.subr.mxu0 0.0
    %1196 = vmatpush1.msra.mxu0 0.0
    %1197 = vmatprep.subr.mxu0 0.0
    %1198 = vmatpush1.msra.mxu0 0.0
    %1199 = vmatprep.subr.mxu0 0.0
    %1200 = vmatpush1.msra.mxu0 0.0
    %1201 = vmatprep.subr.mxu0 0.0
    %1202 = vmatpush1.msra.mxu0 0.0
    %1203 = vmatprep.subr.mxu0 0.0
    %1204 = vmatpush1.msra.mxu0 0.0
    %1205 = vmatprep.subr.mxu0 0.0
    %1206 = vmatpush1.msra.mxu0 0.0
    %1207 = vmatprep.subr.mxu0 0.0
    %1208 = vmatpush1.msra.mxu0 0.0
    %1209 = vmatprep.subr.mxu0 0.0
    %1210 = vmatpush1.msra.mxu0 0.0
    %1211 = vmatprep.mubr.f32.mxu0 0.0
    %1212 = vmatmul.mubr.f32.gmra.mrb[0].mxu0 %v1000
    %v1213 = vpop.f32.mrb[0].mxu0
    %v1214 = vadd.f32 0.0, %v1213
    %v1215 = vpop.f32.mrb[0].mxu0
    %1216 = vdwg.mxu0
    %1217 = vmatprep.subr.mxu0 0.0
    %1218 = vmatpush1.msra.mxu0 %v88
    %1219 = vmatprep.subr.mxu0 0.0
    %1220 = vmatpush1.msra.mxu0 %v89
    %1221 = vmatprep.subr.mxu0 0.0
    %1222 = vmatpush1.msra.mxu0 %v90
    %1223 = vmatprep.subr.mxu0 0.0
    %1224 = vmatpush1.msra.mxu0 %v91
    %1225 = vmatprep.subr.mxu0 0.0
    %1226 = vmatpush1.msra.mxu0 %v92
    %1227 = vmatprep.subr.mxu0 0.0
    %1228 = vmatpush1.msra.mxu0 %v93
    %1229 = vmatprep.subr.mxu0 0.0
    %1230 = vmatpush1.msra.mxu0 %v94
    %1231 = vmatprep.subr.mxu0 0.0
    %1232 = vmatpush1.msra.mxu0 %v95
    %1233 = vmatprep.subr.mxu0 0.0
    %1234 = vmatpush1.msra.mxu0 %v96
    %1235 = vmatprep.subr.mxu0 0.0
    %1236 = vmatpush1.msra.mxu0 %v97
    %1237 = vmatprep.subr.mxu0 0.0
    %1238 = vmatpush1.msra.mxu0 %v98
    %1239 = vmatprep.subr.mxu0 0.0
    %1240 = vmatpush1.msra.mxu0 %v99
    %1241 = vmatprep.subr.mxu0 0.0
    %1242 = vmatpush1.msra.mxu0 %v100
    %1243 = vmatprep.subr.mxu0 0.0
    %1244 = vmatpush1.msra.mxu0 %v101
    %1245 = vmatprep.subr.mxu0 0.0
    %1246 = vmatpush1.msra.mxu0 %v102
    %1247 = vmatprep.subr.mxu0 0.0
    %1248 = vmatpush1.msra.mxu0 %v103
    %1249 = vmatprep.subr.mxu0 0.0
    %1250 = vmatpush1.msra.mxu0 0.0
    %1251 = vmatprep.subr.mxu0 0.0
    %1252 = vmatpush1.msra.mxu0 0.0
    %1253 = vmatprep.subr.mxu0 0.0
    %1254 = vmatpush1.msra.mxu0 0.0
    %1255 = vmatprep.subr.mxu0 0.0
    %1256 = vmatpush1.msra.mxu0 0.0
    %1257 = vmatprep.subr.mxu0 0.0
    %1258 = vmatpush1.msra.mxu0 0.0
    %1259 = vmatprep.subr.mxu0 0.0
    %1260 = vmatpush1.msra.mxu0 0.0
    %1261 = vmatprep.subr.mxu0 0.0
    %1262 = vmatpush1.msra.mxu0 0.0
    %1263 = vmatprep.subr.mxu0 0.0
    %1264 = vmatpush1.msra.mxu0 0.0
    %1265 = vmatprep.subr.mxu0 0.0
    %1266 = vmatpush1.msra.mxu0 0.0
    %1267 = vmatprep.subr.mxu0 0.0
    %1268 = vmatpush1.msra.mxu0 0.0
    %1269 = vmatprep.subr.mxu0 0.0
    %1270 = vmatpush1.msra.mxu0 0.0
    %1271 = vmatprep.subr.mxu0 0.0
    %1272 = vmatpush1.msra.mxu0 0.0
    %1273 = vmatprep.subr.mxu0 0.0
    %1274 = vmatpush1.msra.mxu0 0.0
    %1275 = vmatprep.subr.mxu0 0.0
    %1276 = vmatpush1.msra.mxu0 0.0
    %1277 = vmatprep.subr.mxu0 0.0
    %1278 = vmatpush1.msra.mxu0 0.0
    %1279 = vmatprep.subr.mxu0 0.0
    %1280 = vmatpush1.msra.mxu0 0.0
    %1281 = vmatprep.mubr.f32.mxu0 0.0
    %1282 = vmatmul.mubr.f32.gmra.mrb[0].mxu0 %v1146
    %v1283 = vpop.f32.mrb[0].mxu0
    %v1284 = vadd.f32 %v1214, %v1283
    %v1285 = vpop.f32.mrb[0].mxu0
    %1286 = vdwg.mxu0
    %v1287 = vadd.f32 %v1284, %v421
    %v1288 = vtanh.pop %v1287
    %1289 = vrot.lane.b32.xlu0 %v69, 120
    %v1290 = vpop.permute.xlu0 %1289
    %v1291 = vsel %vm127, %v1290, 0
    %1293 = vmatprep.subr.mxu0 0.0
    %1294 = vmatpush1.msra.mxu0 %v133
    %1295 = vmatprep.subr.mxu0 0.0
    %1296 = vmatpush1.msra.mxu0 0.0
    %1297 = vmatprep.subr.mxu0 0.0
    %1298 = vmatpush1.msra.mxu0 0.0
    %1299 = vmatprep.subr.mxu0 0.0
    %1300 = vmatpush1.msra.mxu0 0.0
    %1301 = vmatprep.subr.mxu0 0.0
    %1302 = vmatpush1.msra.mxu0 0.0
    %1303 = vmatprep.subr.mxu0 0.0
    %1304 = vmatpush1.msra.mxu0 0.0
    %1305 = vmatprep.subr.mxu0 0.0
    %1306 = vmatpush1.msra.mxu0 0.0
    %1307 = vmatprep.subr.mxu0 0.0
    %1308 = vmatpush1.msra.mxu0 0.0
    %1309 = vmatprep.subr.mxu0 0.0
    %1310 = vmatpush1.msra.mxu0 0.0
    %1311 = vmatprep.subr.mxu0 0.0
    %1312 = vmatpush1.msra.mxu0 0.0
    %1313 = vmatprep.subr.mxu0 0.0
    %1314 = vmatpush1.msra.mxu0 0.0
    %1315 = vmatprep.subr.mxu0 0.0
    %1316 = vmatpush1.msra.mxu0 0.0
    %1317 = vmatprep.subr.mxu0 0.0
    %1318 = vmatpush1.msra.mxu0 0.0
    %1319 = vmatprep.subr.mxu0 0.0
    %1320 = vmatpush1.msra.mxu0 0.0
    %1321 = vmatprep.subr.mxu0 0.0
    %1322 = vmatpush1.msra.mxu0 0.0
    %1323 = vmatprep.subr.mxu0 0.0
    %1324 = vmatpush1.msra.mxu0 0.0
    %1325 = vmatprep.subr.mxu0 0.0
    %1326 = vmatpush1.msra.mxu0 0.0
    %1327 = vmatprep.subr.mxu0 0.0
    %1328 = vmatpush1.msra.mxu0 0.0
    %1329 = vmatprep.subr.mxu0 0.0
    %1330 = vmatpush1.msra.mxu0 0.0
    %1331 = vmatprep.subr.mxu0 0.0
    %1332 = vmatpush1.msra.mxu0 0.0
    %1333 = vmatprep.subr.mxu0 0.0
    %1334 = vmatpush1.msra.mxu0 0.0
    %1335 = vmatprep.subr.mxu0 0.0
    %1336 = vmatpush1.msra.mxu0 0.0
    %1337 = vmatprep.subr.mxu0 0.0
    %1338 = vmatpush1.msra.mxu0 0.0
    %1339 = vmatprep.subr.mxu0 0.0
    %1340 = vmatpush1.msra.mxu0 0.0
    %1341 = vmatprep.subr.mxu0 0.0
    %1342 = vmatpush1.msra.mxu0 0.0
    %1343 = vmatprep.subr.mxu0 0.0
    %1344 = vmatpush1.msra.mxu0 0.0
    %1345 = vmatprep.subr.mxu0 0.0
    %1346 = vmatpush1.msra.mxu0 0.0
    %1347 = vmatprep.subr.mxu0 0.0
    %1348 = vmatpush1.msra.mxu0 0.0
    %1349 = vmatprep.subr.mxu0 0.0
    %1350 = vmatpush1.msra.mxu0 0.0
    %1351 = vmatprep.subr.mxu0 0.0
    %1352 = vmatpush1.msra.mxu0 0.0
    %1353 = vmatprep.subr.mxu0 0.0
    %1354 = vmatpush1.msra.mxu0 0.0
    %1355 = vmatprep.subr.mxu0 0.0
    %1356 = vmatpush1.msra.mxu0 0.0
    %1357 = vmatprep.mubr.f32.mxu0 0.0
    %1358 = vmatmul.mubr.f32.gmra.mrb[0].mxu0 %v1291
    %v1359 = vpop.f32.mrb[0].mxu0
    %v1360 = vadd.f32 %v125, %v1359
    %v1361 = vpop.f32.mrb[0].mxu0
    %1362 = vdwg.mxu0
    %1363 = vmatprep.subr.mxu0 0.0
    %1364 = vmatpush1.msra.mxu0 %v71
    %1365 = vmatprep.subr.mxu0 0.0
    %1366 = vmatpush1.msra.mxu0 %v72
    %1367 = vmatprep.subr.mxu0 0.0
    %1368 = vmatpush1.msra.mxu0 %v73
    %1369 = vmatprep.subr.mxu0 0.0
    %1370 = vmatpush1.msra.mxu0 %v74
    %1371 = vmatprep.subr.mxu0 0.0
    %1372 = vmatpush1.msra.mxu0 %v75
    %1373 = vmatprep.subr.mxu0 0.0
    %1374 = vmatpush1.msra.mxu0 %v76
    %1375 = vmatprep.subr.mxu0 0.0
    %1376 = vmatpush1.msra.mxu0 %v77
    %1377 = vmatprep.subr.mxu0 0.0
    %1378 = vmatpush1.msra.mxu0 %v78
    %1379 = vmatprep.subr.mxu0 0.0
    %1380 = vmatpush1.msra.mxu0 %v79
    %1381 = vmatprep.subr.mxu0 0.0
    %1382 = vmatpush1.msra.mxu0 %v80
    %1383 = vmatprep.subr.mxu0 0.0
    %1384 = vmatpush1.msra.mxu0 %v81
    %1385 = vmatprep.subr.mxu0 0.0
    %1386 = vmatpush1.msra.mxu0 %v82
    %1387 = vmatprep.subr.mxu0 0.0
    %1388 = vmatpush1.msra.mxu0 %v83
    %1389 = vmatprep.subr.mxu0 0.0
    %1390 = vmatpush1.msra.mxu0 %v84
    %1391 = vmatprep.subr.mxu0 0.0
    %1392 = vmatpush1.msra.mxu0 %v85
    %1393 = vmatprep.subr.mxu0 0.0
    %1394 = vmatpush1.msra.mxu0 %v86
    %1395 = vmatprep.subr.mxu0 0.0
    %1396 = vmatpush1.msra.mxu0 0.0
    %1397 = vmatprep.subr.mxu0 0.0
    %1398 = vmatpush1.msra.mxu0 0.0
    %1399 = vmatprep.subr.mxu0 0.0
    %1400 = vmatpush1.msra.mxu0 0.0
    %1401 = vmatprep.subr.mxu0 0.0
    %1402 = vmatpush1.msra.mxu0 0.0
    %1403 = vmatprep.subr.mxu0 0.0
    %1404 = vmatpush1.msra.mxu0 0.0
    %1405 = vmatprep.subr.mxu0 0.0
    %1406 = vmatpush1.msra.mxu0 0.0
    %1407 = vmatprep.subr.mxu0 0.0
    %1408 = vmatpush1.msra.mxu0 0.0
    %1409 = vmatprep.subr.mxu0 0.0
    %1410 = vmatpush1.msra.mxu0 0.0
    %1411 = vmatprep.subr.mxu0 0.0
    %1412 = vmatpush1.msra.mxu0 0.0
    %1413 = vmatprep.subr.mxu0 0.0
    %1414 = vmatpush1.msra.mxu0 0.0
    %1415 = vmatprep.subr.mxu0 0.0
    %1416 = vmatpush1.msra.mxu0 0.0
    %1417 = vmatprep.subr.mxu0 0.0
    %1418 = vmatpush1.msra.mxu0 0.0
    %1419 = vmatprep.subr.mxu0 0.0
    %1420 = vmatpush1.msra.mxu0 0.0
    %1421 = vmatprep.subr.mxu0 0.0
    %1422 = vmatpush1.msra.mxu0 0.0
    %1423 = vmatprep.subr.mxu0 0.0
    %1424 = vmatpush1.msra.mxu0 0.0
    %1425 = vmatprep.subr.mxu0 0.0
    %1426 = vmatpush1.msra.mxu0 0.0
    %1427 = vmatprep.mubr.f32.mxu0 0.0
    %1428 = vmatmul.mubr.f32.gmra.mrb[0].mxu0 %v1146
    %v1429 = vpop.f32.mrb[0].mxu0
    %v1430 = vadd.f32 0.0, %v1429
    %v1431 = vpop.f32.mrb[0].mxu0
    %1432 = vdwg.mxu0
    %v1433 = vadd.f32 %v1360, %v1430
    %v1434 = vtanh.pop %v1433
    %1435 = vmatprep.subr.mxu0 0.0
    %1436 = vmatpush1.msra.mxu0 %v104
    %1437 = vmatprep.subr.mxu0 0.0
    %1438 = vmatpush1.msra.mxu0 %v105
    %1439 = vmatprep.subr.mxu0 0.0
    %1440 = vmatpush1.msra.mxu0 %v106
    %1441 = vmatprep.subr.mxu0 0.0
    %1442 = vmatpush1.msra.mxu0 %v107
    %1443 = vmatprep.subr.mxu0 0.0
    %1444 = vmatpush1.msra.mxu0 %v108
    %1445 = vmatprep.subr.mxu0 0.0
    %1446 = vmatpush1.msra.mxu0 %v109
    %1447 = vmatprep.subr.mxu0 0.0
    %1448 = vmatpush1.msra.mxu0 %v110
    %1449 = vmatprep.subr.mxu0 0.0
    %1450 = vmatpush1.msra.mxu0 %v111
    %1451 = vmatprep.subr.mxu0 0.0
    %1452 = vmatpush1.msra.mxu0 %v112
    %1453 = vmatprep.subr.mxu0 0.0
    %1454 = vmatpush1.msra.mxu0 %v113
    %1455 = vmatprep.subr.mxu0 0.0
    %1456 = vmatpush1.msra.mxu0 %v114
    %1457 = vmatprep.subr.mxu0 0.0
    %1458 = vmatpush1.msra.mxu0 %v115
    %1459 = vmatprep.subr.mxu0 0.0
    %1460 = vmatpush1.msra.mxu0 %v116
    %1461 = vmatprep.subr.mxu0 0.0
    %1462 = vmatpush1.msra.mxu0 %v117
    %1463 = vmatprep.subr.mxu0 0.0
    %1464 = vmatpush1.msra.mxu0 %v118
    %1465 = vmatprep.subr.mxu0 0.0
    %1466 = vmatpush1.msra.mxu0 %v119
    %1467 = vmatprep.subr.mxu0 0.0
    %1468 = vmatpush1.msra.mxu0 0.0
    %1469 = vmatprep.subr.mxu0 0.0
    %1470 = vmatpush1.msra.mxu0 0.0
    %1471 = vmatprep.subr.mxu0 0.0
    %1472 = vmatpush1.msra.mxu0 0.0
    %1473 = vmatprep.subr.mxu0 0.0
    %1474 = vmatpush1.msra.mxu0 0.0
    %1475 = vmatprep.subr.mxu0 0.0
    %1476 = vmatpush1.msra.mxu0 0.0
    %1477 = vmatprep.subr.mxu0 0.0
    %1478 = vmatpush1.msra.mxu0 0.0
    %1479 = vmatprep.subr.mxu0 0.0
    %1480 = vmatpush1.msra.mxu0 0.0
    %1481 = vmatprep.subr.mxu0 0.0
    %1482 = vmatpush1.msra.mxu0 0.0
    %1483 = vmatprep.subr.mxu0 0.0
    %1484 = vmatpush1.msra.mxu0 0.0
    %1485 = vmatprep.subr.mxu0 0.0
    %1486 = vmatpush1.msra.mxu0 0.0
    %1487 = vmatprep.subr.mxu0 0.0
    %1488 = vmatpush1.msra.mxu0 0.0
    %1489 = vmatprep.subr.mxu0 0.0
    %1490 = vmatpush1.msra.mxu0 0.0
    %1491 = vmatprep.subr.mxu0 0.0
    %1492 = vmatpush1.msra.mxu0 0.0
    %1493 = vmatprep.subr.mxu0 0.0
    %1494 = vmatpush1.msra.mxu0 0.0
    %1495 = vmatprep.subr.mxu0 0.0
    %1496 = vmatpush1.msra.mxu0 0.0
    %1497 = vmatprep.subr.mxu0 0.0
    %1498 = vmatpush1.msra.mxu0 0.0
    %1499 = vmatprep.mubr.f32.mxu0 0.0
    %1500 = vmatmul.mubr.f32.gmra.mrb[0].mxu0 %v1288
    %v1501 = vpop.f32.mrb[0].mxu0
    %v1502 = vadd.f32 0.0, %v1501
    %v1503 = vpop.f32.mrb[0].mxu0
    %1504 = vdwg.mxu0
    %1505 = vmatprep.subr.mxu0 0.0
    %1506 = vmatpush1.msra.mxu0 %v88
    %1507 = vmatprep.subr.mxu0 0.0
    %1508 = vmatpush1.msra.mxu0 %v89
    %1509 = vmatprep.subr.mxu0 0.0
    %1510 = vmatpush1.msra.mxu0 %v90
    %1511 = vmatprep.subr.mxu0 0.0
    %1512 = vmatpush1.msra.mxu0 %v91
    %1513 = vmatprep.subr.mxu0 0.0
    %1514 = vmatpush1.msra.mxu0 %v92
    %1515 = vmatprep.subr.mxu0 0.0
    %1516 = vmatpush1.msra.mxu0 %v93
    %1517 = vmatprep.subr.mxu0 0.0
    %1518 = vmatpush1.msra.mxu0 %v94
    %1519 = vmatprep.subr.mxu0 0.0
    %1520 = vmatpush1.msra.mxu0 %v95
    %1521 = vmatprep.subr.mxu0 0.0
    %1522 = vmatpush1.msra.mxu0 %v96
    %1523 = vmatprep.subr.mxu0 0.0
    %1524 = vmatpush1.msra.mxu0 %v97
    %1525 = vmatprep.subr.mxu0 0.0
    %1526 = vmatpush1.msra.mxu0 %v98
    %1527 = vmatprep.subr.mxu0 0.0
    %1528 = vmatpush1.msra.mxu0 %v99
    %1529 = vmatprep.subr.mxu0 0.0
    %1530 = vmatpush1.msra.mxu0 %v100
    %1531 = vmatprep.subr.mxu0 0.0
    %1532 = vmatpush1.msra.mxu0 %v101
    %1533 = vmatprep.subr.mxu0 0.0
    %1534 = vmatpush1.msra.mxu0 %v102
    %1535 = vmatprep.subr.mxu0 0.0
    %1536 = vmatpush1.msra.mxu0 %v103
    %1537 = vmatprep.subr.mxu0 0.0
    %1538 = vmatpush1.msra.mxu0 0.0
    %1539 = vmatprep.subr.mxu0 0.0
    %1540 = vmatpush1.msra.mxu0 0.0
    %1541 = vmatprep.subr.mxu0 0.0
    %1542 = vmatpush1.msra.mxu0 0.0
    %1543 = vmatprep.subr.mxu0 0.0
    %1544 = vmatpush1.msra.mxu0 0.0
    %1545 = vmatprep.subr.mxu0 0.0
    %1546 = vmatpush1.msra.mxu0 0.0
    %1547 = vmatprep.subr.mxu0 0.0
    %1548 = vmatpush1.msra.mxu0 0.0
    %1549 = vmatprep.subr.mxu0 0.0
    %1550 = vmatpush1.msra.mxu0 0.0
    %1551 = vmatprep.subr.mxu0 0.0
    %1552 = vmatpush1.msra.mxu0 0.0
    %1553 = vmatprep.subr.mxu0 0.0
    %1554 = vmatpush1.msra.mxu0 0.0
    %1555 = vmatprep.subr.mxu0 0.0
    %1556 = vmatpush1.msra.mxu0 0.0
    %1557 = vmatprep.subr.mxu0 0.0
    %1558 = vmatpush1.msra.mxu0 0.0
    %1559 = vmatprep.subr.mxu0 0.0
    %1560 = vmatpush1.msra.mxu0 0.0
    %1561 = vmatprep.subr.mxu0 0.0
    %1562 = vmatpush1.msra.mxu0 0.0
    %1563 = vmatprep.subr.mxu0 0.0
    %1564 = vmatpush1.msra.mxu0 0.0
    %1565 = vmatprep.subr.mxu0 0.0
    %1566 = vmatpush1.msra.mxu0 0.0
    %1567 = vmatprep.subr.mxu0 0.0
    %1568 = vmatpush1.msra.mxu0 0.0
    %1569 = vmatprep.mubr.f32.mxu0 0.0
    %1570 = vmatmul.mubr.f32.gmra.mrb[0].mxu0 %v1434
    %v1571 = vpop.f32.mrb[0].mxu0
    %v1572 = vadd.f32 %v1502, %v1571
    %v1573 = vpop.f32.mrb[0].mxu0
    %1574 = vdwg.mxu0
    %v1575 = vadd.f32 %v1572, %v421
    %v1576 = vtanh.pop %v1575
    %1577 = vrot.lane.b32.xlu0 %v69, 118
    %v1578 = vpop.permute.xlu0 %1577
    %v1579 = vsel %vm127, %v1578, 0
    %1581 = vmatprep.subr.mxu0 0.0
    %1582 = vmatpush1.msra.mxu0 %v133
    %1583 = vmatprep.subr.mxu0 0.0
    %1584 = vmatpush1.msra.mxu0 0.0
    %1585 = vmatprep.subr.mxu0 0.0
    %1586 = vmatpush1.msra.mxu0 0.0
    %1587 = vmatprep.subr.mxu0 0.0
    %1588 = vmatpush1.msra.mxu0 0.0
    %1589 = vmatprep.subr.mxu0 0.0
    %1590 = vmatpush1.msra.mxu0 0.0
    %1591 = vmatprep.subr.mxu0 0.0
    %1592 = vmatpush1.msra.mxu0 0.0
    %1593 = vmatprep.subr.mxu0 0.0
    %1594 = vmatpush1.msra.mxu0 0.0
    %1595 = vmatprep.subr.mxu0 0.0
    %1596 = vmatpush1.msra.mxu0 0.0
    %1597 = vmatprep.subr.mxu0 0.0
    %1598 = vmatpush1.msra.mxu0 0.0
    %1599 = vmatprep.subr.mxu0 0.0
    %1600 = vmatpush1.msra.mxu0 0.0
    %1601 = vmatprep.subr.mxu0 0.0
    %1602 = vmatpush1.msra.mxu0 0.0
    %1603 = vmatprep.subr.mxu0 0.0
    %1604 = vmatpush1.msra.mxu0 0.0
    %1605 = vmatprep.subr.mxu0 0.0
    %1606 = vmatpush1.msra.mxu0 0.0
    %1607 = vmatprep.subr.mxu0 0.0
    %1608 = vmatpush1.msra.mxu0 0.0
    %1609 = vmatprep.subr.mxu0 0.0
    %1610 = vmatpush1.msra.mxu0 0.0
    %1611 = vmatprep.subr.mxu0 0.0
    %1612 = vmatpush1.msra.mxu0 0.0
    %1613 = vmatprep.subr.mxu0 0.0
    %1614 = vmatpush1.msra.mxu0 0.0
    %1615 = vmatprep.subr.mxu0 0.0
    %1616 = vmatpush1.msra.mxu0 0.0
    %1617 = vmatprep.subr.mxu0 0.0
    %1618 = vmatpush1.msra.mxu0 0.0
    %1619 = vmatprep.subr.mxu0 0.0
    %1620 = vmatpush1.msra.mxu0 0.0
    %1621 = vmatprep.subr.mxu0 0.0
    %1622 = vmatpush1.msra.mxu0 0.0
    %1623 = vmatprep.subr.mxu0 0.0
    %1624 = vmatpush1.msra.mxu0 0.0
    %1625 = vmatprep.subr.mxu0 0.0
    %1626 = vmatpush1.msra.mxu0 0.0
    %1627 = vmatprep.subr.mxu0 0.0
    %1628 = vmatpush1.msra.mxu0 0.0
    %1629 = vmatprep.subr.mxu0 0.0
    %1630 = vmatpush1.msra.mxu0 0.0
    %1631 = vmatprep.subr.mxu0 0.0
    %1632 = vmatpush1.msra.mxu0 0.0
    %1633 = vmatprep.subr.mxu0 0.0
    %1634 = vmatpush1.msra.mxu0 0.0
    %1635 = vmatprep.subr.mxu0 0.0
    %1636 = vmatpush1.msra.mxu0 0.0
    %1637 = vmatprep.subr.mxu0 0.0
    %1638 = vmatpush1.msra.mxu0 0.0
    %1639 = vmatprep.subr.mxu0 0.0
    %1640 = vmatpush1.msra.mxu0 0.0
    %1641 = vmatprep.subr.mxu0 0.0
    %1642 = vmatpush1.msra.mxu0 0.0
    %1643 = vmatprep.subr.mxu0 0.0
    %1644 = vmatpush1.msra.mxu0 0.0
    %1645 = vmatprep.mubr.f32.mxu0 0.0
    %1646 = vmatmul.mubr.f32.gmra.mrb[0].mxu0 %v1579
    %v1647 = vpop.f32.mrb[0].mxu0
    %v1648 = vadd.f32 %v125, %v1647
    %v1649 = vpop.f32.mrb[0].mxu0
    %1650 = vdwg.mxu0
    %1651 = vmatprep.subr.mxu0 0.0
    %1652 = vmatpush1.msra.mxu0 %v71
    %1653 = vmatprep.subr.mxu0 0.0
    %1654 = vmatpush1.msra.mxu0 %v72
    %1655 = vmatprep.subr.mxu0 0.0
    %1656 = vmatpush1.msra.mxu0 %v73
    %1657 = vmatprep.subr.mxu0 0.0
    %1658 = vmatpush1.msra.mxu0 %v74
    %1659 = vmatprep.subr.mxu0 0.0
    %1660 = vmatpush1.msra.mxu0 %v75
    %1661 = vmatprep.subr.mxu0 0.0
    %1662 = vmatpush1.msra.mxu0 %v76
    %1663 = vmatprep.subr.mxu0 0.0
    %1664 = vmatpush1.msra.mxu0 %v77
    %1665 = vmatprep.subr.mxu0 0.0
    %1666 = vmatpush1.msra.mxu0 %v78
    %1667 = vmatprep.subr.mxu0 0.0
    %1668 = vmatpush1.msra.mxu0 %v79
    %1669 = vmatprep.subr.mxu0 0.0
    %1670 = vmatpush1.msra.mxu0 %v80
    %1671 = vmatprep.subr.mxu0 0.0
    %1672 = vmatpush1.msra.mxu0 %v81
    %1673 = vmatprep.subr.mxu0 0.0
    %1674 = vmatpush1.msra.mxu0 %v82
    %1675 = vmatprep.subr.mxu0 0.0
    %1676 = vmatpush1.msra.mxu0 %v83
    %1677 = vmatprep.subr.mxu0 0.0
    %1678 = vmatpush1.msra.mxu0 %v84
    %1679 = vmatprep.subr.mxu0 0.0
    %1680 = vmatpush1.msra.mxu0 %v85
    %1681 = vmatprep.subr.mxu0 0.0
    %1682 = vmatpush1.msra.mxu0 %v86
    %1683 = vmatprep.subr.mxu0 0.0
    %1684 = vmatpush1.msra.mxu0 0.0
    %1685 = vmatprep.subr.mxu0 0.0
    %1686 = vmatpush1.msra.mxu0 0.0
    %1687 = vmatprep.subr.mxu0 0.0
    %1688 = vmatpush1.msra.mxu0 0.0
    %1689 = vmatprep.subr.mxu0 0.0
    %1690 = vmatpush1.msra.mxu0 0.0
    %1691 = vmatprep.subr.mxu0 0.0
    %1692 = vmatpush1.msra.mxu0 0.0
    %1693 = vmatprep.subr.mxu0 0.0
    %1694 = vmatpush1.msra.mxu0 0.0
    %1695 = vmatprep.subr.mxu0 0.0
    %1696 = vmatpush1.msra.mxu0 0.0
    %1697 = vmatprep.subr.mxu0 0.0
    %1698 = vmatpush1.msra.mxu0 0.0
    %1699 = vmatprep.subr.mxu0 0.0
    %1700 = vmatpush1.msra.mxu0 0.0
    %1701 = vmatprep.subr.mxu0 0.0
    %1702 = vmatpush1.msra.mxu0 0.0
    %1703 = vmatprep.subr.mxu0 0.0
    %1704 = vmatpush1.msra.mxu0 0.0
    %1705 = vmatprep.subr.mxu0 0.0
    %1706 = vmatpush1.msra.mxu0 0.0
    %1707 = vmatprep.subr.mxu0 0.0
    %1708 = vmatpush1.msra.mxu0 0.0
    %1709 = vmatprep.subr.mxu0 0.0
    %1710 = vmatpush1.msra.mxu0 0.0
    %1711 = vmatprep.subr.mxu0 0.0
    %1712 = vmatpush1.msra.mxu0 0.0
    %1713 = vmatprep.subr.mxu0 0.0
    %1714 = vmatpush1.msra.mxu0 0.0
    %1715 = vmatprep.mubr.f32.mxu0 0.0
    %1716 = vmatmul.mubr.f32.gmra.mrb[0].mxu0 %v1434
    %v1717 = vpop.f32.mrb[0].mxu0
    %v1718 = vadd.f32 0.0, %v1717
    %v1719 = vpop.f32.mrb[0].mxu0
    %1720 = vdwg.mxu0
    %v1721 = vadd.f32 %v1648, %v1718
    %v1722 = vtanh.pop %v1721
    %1723 = vmatprep.subr.mxu0 0.0
    %1724 = vmatpush1.msra.mxu0 %v104
    %1725 = vmatprep.subr.mxu0 0.0
    %1726 = vmatpush1.msra.mxu0 %v105
    %1727 = vmatprep.subr.mxu0 0.0
    %1728 = vmatpush1.msra.mxu0 %v106
    %1729 = vmatprep.subr.mxu0 0.0
    %1730 = vmatpush1.msra.mxu0 %v107
    %1731 = vmatprep.subr.mxu0 0.0
    %1732 = vmatpush1.msra.mxu0 %v108
    %1733 = vmatprep.subr.mxu0 0.0
    %1734 = vmatpush1.msra.mxu0 %v109
    %1735 = vmatprep.subr.mxu0 0.0
    %1736 = vmatpush1.msra.mxu0 %v110
    %1737 = vmatprep.subr.mxu0 0.0
    %1738 = vmatpush1.msra.mxu0 %v111
    %1739 = vmatprep.subr.mxu0 0.0
    %1740 = vmatpush1.msra.mxu0 %v112
    %1741 = vmatprep.subr.mxu0 0.0
    %1742 = vmatpush1.msra.mxu0 %v113
    %1743 = vmatprep.subr.mxu0 0.0
    %1744 = vmatpush1.msra.mxu0 %v114
    %1745 = vmatprep.subr.mxu0 0.0
    %1746 = vmatpush1.msra.mxu0 %v115
    %1747 = vmatprep.subr.mxu0 0.0
    %1748 = vmatpush1.msra.mxu0 %v116
    %1749 = vmatprep.subr.mxu0 0.0
    %1750 = vmatpush1.msra.mxu0 %v117
    %1751 = vmatprep.subr.mxu0 0.0
    %1752 = vmatpush1.msra.mxu0 %v118
    %1753 = vmatprep.subr.mxu0 0.0
    %1754 = vmatpush1.msra.mxu0 %v119
    %1755 = vmatprep.subr.mxu0 0.0
    %1756 = vmatpush1.msra.mxu0 0.0
    %1757 = vmatprep.subr.mxu0 0.0
    %1758 = vmatpush1.msra.mxu0 0.0
    %1759 = vmatprep.subr.mxu0 0.0
    %1760 = vmatpush1.msra.mxu0 0.0
    %1761 = vmatprep.subr.mxu0 0.0
    %1762 = vmatpush1.msra.mxu0 0.0
    %1763 = vmatprep.subr.mxu0 0.0
    %1764 = vmatpush1.msra.mxu0 0.0
    %1765 = vmatprep.subr.mxu0 0.0
    %1766 = vmatpush1.msra.mxu0 0.0
    %1767 = vmatprep.subr.mxu0 0.0
    %1768 = vmatpush1.msra.mxu0 0.0
    %1769 = vmatprep.subr.mxu0 0.0
    %1770 = vmatpush1.msra.mxu0 0.0
    %1771 = vmatprep.subr.mxu0 0.0
    %1772 = vmatpush1.msra.mxu0 0.0
    %1773 = vmatprep.subr.mxu0 0.0
    %1774 = vmatpush1.msra.mxu0 0.0
    %1775 = vmatprep.subr.mxu0 0.0
    %1776 = vmatpush1.msra.mxu0 0.0
    %1777 = vmatprep.subr.mxu0 0.0
    %1778 = vmatpush1.msra.mxu0 0.0
    %1779 = vmatprep.subr.mxu0 0.0
    %1780 = vmatpush1.msra.mxu0 0.0
    %1781 = vmatprep.subr.mxu0 0.0
    %1782 = vmatpush1.msra.mxu0 0.0
    %1783 = vmatprep.subr.mxu0 0.0
    %1784 = vmatpush1.msra.mxu0 0.0
    %1785 = vmatprep.subr.mxu0 0.0
    %1786 = vmatpush1.msra.mxu0 0.0
    %1787 = vmatprep.mubr.f32.mxu0 0.0
    %1788 = vmatmul.mubr.f32.gmra.mrb[0].mxu0 %v1576
    %v1789 = vpop.f32.mrb[0].mxu0
    %v1790 = vadd.f32 0.0, %v1789
    %v1791 = vpop.f32.mrb[0].mxu0
    %1792 = vdwg.mxu0
    %1793 = vmatprep.subr.mxu0 0.0
    %1794 = vmatpush1.msra.mxu0 %v88
    %1795 = vmatprep.subr.mxu0 0.0
    %1796 = vmatpush1.msra.mxu0 %v89
    %1797 = vmatprep.subr.mxu0 0.0
    %1798 = vmatpush1.msra.mxu0 %v90
    %1799 = vmatprep.subr.mxu0 0.0
    %1800 = vmatpush1.msra.mxu0 %v91
    %1801 = vmatprep.subr.mxu0 0.0
    %1802 = vmatpush1.msra.mxu0 %v92
    %1803 = vmatprep.subr.mxu0 0.0
    %1804 = vmatpush1.msra.mxu0 %v93
    %1805 = vmatprep.subr.mxu0 0.0
    %1806 = vmatpush1.msra.mxu0 %v94
    %1807 = vmatprep.subr.mxu0 0.0
    %1808 = vmatpush1.msra.mxu0 %v95
    %1809 = vmatprep.subr.mxu0 0.0
    %1810 = vmatpush1.msra.mxu0 %v96
    %1811 = vmatprep.subr.mxu0 0.0
    %1812 = vmatpush1.msra.mxu0 %v97
    %1813 = vmatprep.subr.mxu0 0.0
    %1814 = vmatpush1.msra.mxu0 %v98
    %1815 = vmatprep.subr.mxu0 0.0
    %1816 = vmatpush1.msra.mxu0 %v99
    %1817 = vmatprep.subr.mxu0 0.0
    %1818 = vmatpush1.msra.mxu0 %v100
    %1819 = vmatprep.subr.mxu0 0.0
    %1820 = vmatpush1.msra.mxu0 %v101
    %1821 = vmatprep.subr.mxu0 0.0
    %1822 = vmatpush1.msra.mxu0 %v102
    %1823 = vmatprep.subr.mxu0 0.0
    %1824 = vmatpush1.msra.mxu0 %v103
    %1825 = vmatprep.subr.mxu0 0.0
    %1826 = vmatpush1.msra.mxu0 0.0
    %1827 = vmatprep.subr.mxu0 0.0
    %1828 = vmatpush1.msra.mxu0 0.0
    %1829 = vmatprep.subr.mxu0 0.0
    %1830 = vmatpush1.msra.mxu0 0.0
    %1831 = vmatprep.subr.mxu0 0.0
    %1832 = vmatpush1.msra.mxu0 0.0
    %1833 = vmatprep.subr.mxu0 0.0
    %1834 = vmatpush1.msra.mxu0 0.0
    %1835 = vmatprep.subr.mxu0 0.0
    %1836 = vmatpush1.msra.mxu0 0.0
    %1837 = vmatprep.subr.mxu0 0.0
    %1838 = vmatpush1.msra.mxu0 0.0
    %1839 = vmatprep.subr.mxu0 0.0
    %1840 = vmatpush1.msra.mxu0 0.0
    %1841 = vmatprep.subr.mxu0 0.0
    %1842 = vmatpush1.msra.mxu0 0.0
    %1843 = vmatprep.subr.mxu0 0.0
    %1844 = vmatpush1.msra.mxu0 0.0
    %1845 = vmatprep.subr.mxu0 0.0
    %1846 = vmatpush1.msra.mxu0 0.0
    %1847 = vmatprep.subr.mxu0 0.0
    %1848 = vmatpush1.msra.mxu0 0.0
    %1849 = vmatprep.subr.mxu0 0.0
    %1850 = vmatpush1.msra.mxu0 0.0
    %1851 = vmatprep.subr.mxu0 0.0
    %1852 = vmatpush1.msra.mxu0 0.0
    %1853 = vmatprep.subr.mxu0 0.0
    %1854 = vmatpush1.msra.mxu0 0.0
    %1855 = vmatprep.subr.mxu0 0.0
    %1856 = vmatpush1.msra.mxu0 0.0
    %1857 = vmatprep.mubr.f32.mxu0 0.0
    %1858 = vmatmul.mubr.f32.gmra.mrb[0].mxu0 %v1722
    %v1859 = vpop.f32.mrb[0].mxu0
    %v1860 = vadd.f32 %v1790, %v1859
    %v1861 = vpop.f32.mrb[0].mxu0
    %1862 = vdwg.mxu0
    %v1863 = vadd.f32 %v1860, %v421
    %v1864 = vtanh.pop %v1863
    %1865 = vrot.lane.b32.xlu0 %v69, 116
    %v1866 = vpop.permute.xlu0 %1865
    %v1867 = vsel %vm127, %v1866, 0
    %1869 = vmatprep.subr.mxu0 0.0
    %1870 = vmatpush1.msra.mxu0 %v133
    %1871 = vmatprep.subr.mxu0 0.0
    %1872 = vmatpush1.msra.mxu0 0.0
    %1873 = vmatprep.subr.mxu0 0.0
    %1874 = vmatpush1.msra.mxu0 0.0
    %1875 = vmatprep.subr.mxu0 0.0
    %1876 = vmatpush1.msra.mxu0 0.0
    %1877 = vmatprep.subr.mxu0 0.0
    %1878 = vmatpush1.msra.mxu0 0.0
    %1879 = vmatprep.subr.mxu0 0.0
    %1880 = vmatpush1.msra.mxu0 0.0
    %1881 = vmatprep.subr.mxu0 0.0
    %1882 = vmatpush1.msra.mxu0 0.0
    %1883 = vmatprep.subr.mxu0 0.0
    %1884 = vmatpush1.msra.mxu0 0.0
    %1885 = vmatprep.subr.mxu0 0.0
    %1886 = vmatpush1.msra.mxu0 0.0
    %1887 = vmatprep.subr.mxu0 0.0
    %1888 = vmatpush1.msra.mxu0 0.0
    %1889 = vmatprep.subr.mxu0 0.0
    %1890 = vmatpush1.msra.mxu0 0.0
    %1891 = vmatprep.subr.mxu0 0.0
    %1892 = vmatpush1.msra.mxu0 0.0
    %1893 = vmatprep.subr.mxu0 0.0
    %1894 = vmatpush1.msra.mxu0 0.0
    %1895 = vmatprep.subr.mxu0 0.0
    %1896 = vmatpush1.msra.mxu0 0.0
    %1897 = vmatprep.subr.mxu0 0.0
    %1898 = vmatpush1.msra.mxu0 0.0
    %1899 = vmatprep.subr.mxu0 0.0
    %1900 = vmatpush1.msra.mxu0 0.0
    %1901 = vmatprep.subr.mxu0 0.0
    %1902 = vmatpush1.msra.mxu0 0.0
    %1903 = vmatprep.subr.mxu0 0.0
    %1904 = vmatpush1.msra.mxu0 0.0
    %1905 = vmatprep.subr.mxu0 0.0
    %1906 = vmatpush1.msra.mxu0 0.0
    %1907 = vmatprep.subr.mxu0 0.0
    %1908 = vmatpush1.msra.mxu0 0.0
    %1909 = vmatprep.subr.mxu0 0.0
    %1910 = vmatpush1.msra.mxu0 0.0
    %1911 = vmatprep.subr.mxu0 0.0
    %1912 = vmatpush1.msra.mxu0 0.0
    %1913 = vmatprep.subr.mxu0 0.0
    %1914 = vmatpush1.msra.mxu0 0.0
    %1915 = vmatprep.subr.mxu0 0.0
    %1916 = vmatpush1.msra.mxu0 0.0
    %1917 = vmatprep.subr.mxu0 0.0
    %1918 = vmatpush1.msra.mxu0 0.0
    %1919 = vmatprep.subr.mxu0 0.0
    %1920 = vmatpush1.msra.mxu0 0.0
    %1921 = vmatprep.subr.mxu0 0.0
    %1922 = vmatpush1.msra.mxu0 0.0
    %1923 = vmatprep.subr.mxu0 0.0
    %1924 = vmatpush1.msra.mxu0 0.0
    %1925 = vmatprep.subr.mxu0 0.0
    %1926 = vmatpush1.msra.mxu0 0.0
    %1927 = vmatprep.subr.mxu0 0.0
    %1928 = vmatpush1.msra.mxu0 0.0
    %1929 = vmatprep.subr.mxu0 0.0
    %1930 = vmatpush1.msra.mxu0 0.0
    %1931 = vmatprep.subr.mxu0 0.0
    %1932 = vmatpush1.msra.mxu0 0.0
    %1933 = vmatprep.mubr.f32.mxu0 0.0
    %1934 = vmatmul.mubr.f32.gmra.mrb[0].mxu0 %v1867
    %v1935 = vpop.f32.mrb[0].mxu0
    %v1936 = vadd.f32 %v125, %v1935
    %v1937 = vpop.f32.mrb[0].mxu0
    %1938 = vdwg.mxu0
    %1939 = vmatprep.subr.mxu0 0.0
    %1940 = vmatpush1.msra.mxu0 %v71
    %1941 = vmatprep.subr.mxu0 0.0
    %1942 = vmatpush1.msra.mxu0 %v72
    %1943 = vmatprep.subr.mxu0 0.0
    %1944 = vmatpush1.msra.mxu0 %v73
    %1945 = vmatprep.subr.mxu0 0.0
    %1946 = vmatpush1.msra.mxu0 %v74
    %1947 = vmatprep.subr.mxu0 0.0
    %1948 = vmatpush1.msra.mxu0 %v75
    %1949 = vmatprep.subr.mxu0 0.0
    %1950 = vmatpush1.msra.mxu0 %v76
    %1951 = vmatprep.subr.mxu0 0.0
    %1952 = vmatpush1.msra.mxu0 %v77
    %1953 = vmatprep.subr.mxu0 0.0
    %1954 = vmatpush1.msra.mxu0 %v78
    %1955 = vmatprep.subr.mxu0 0.0
    %1956 = vmatpush1.msra.mxu0 %v79
    %1957 = vmatprep.subr.mxu0 0.0
    %1958 = vmatpush1.msra.mxu0 %v80
    %1959 = vmatprep.subr.mxu0 0.0
    %1960 = vmatpush1.msra.mxu0 %v81
    %1961 = vmatprep.subr.mxu0 0.0
    %1962 = vmatpush1.msra.mxu0 %v82
    %1963 = vmatprep.subr.mxu0 0.0
    %1964 = vmatpush1.msra.mxu0 %v83
    %1965 = vmatprep.subr.mxu0 0.0
    %1966 = vmatpush1.msra.mxu0 %v84
    %1967 = vmatprep.subr.mxu0 0.0
    %1968 = vmatpush1.msra.mxu0 %v85
    %1969 = vmatprep.subr.mxu0 0.0
    %1970 = vmatpush1.msra.mxu0 %v86
    %1971 = vmatprep.subr.mxu0 0.0
    %1972 = vmatpush1.msra.mxu0 0.0
    %1973 = vmatprep.subr.mxu0 0.0
    %1974 = vmatpush1.msra.mxu0 0.0
    %1975 = vmatprep.subr.mxu0 0.0
    %1976 = vmatpush1.msra.mxu0 0.0
    %1977 = vmatprep.subr.mxu0 0.0
    %1978 = vmatpush1.msra.mxu0 0.0
    %1979 = vmatprep.subr.mxu0 0.0
    %1980 = vmatpush1.msra.mxu0 0.0
    %1981 = vmatprep.subr.mxu0 0.0
    %1982 = vmatpush1.msra.mxu0 0.0
    %1983 = vmatprep.subr.mxu0 0.0
    %1984 = vmatpush1.msra.mxu0 0.0
    %1985 = vmatprep.subr.mxu0 0.0
    %1986 = vmatpush1.msra.mxu0 0.0
    %1987 = vmatprep.subr.mxu0 0.0
    %1988 = vmatpush1.msra.mxu0 0.0
    %1989 = vmatprep.subr.mxu0 0.0
    %1990 = vmatpush1.msra.mxu0 0.0
    %1991 = vmatprep.subr.mxu0 0.0
    %1992 = vmatpush1.msra.mxu0 0.0
    %1993 = vmatprep.subr.mxu0 0.0
    %1994 = vmatpush1.msra.mxu0 0.0
    %1995 = vmatprep.subr.mxu0 0.0
    %1996 = vmatpush1.msra.mxu0 0.0
    %1997 = vmatprep.subr.mxu0 0.0
    %1998 = vmatpush1.msra.mxu0 0.0
    %1999 = vmatprep.subr.mxu0 0.0
    %2000 = vmatpush1.msra.mxu0 0.0
    %2001 = vmatprep.subr.mxu0 0.0
    %2002 = vmatpush1.msra.mxu0 0.0
    %2003 = vmatprep.mubr.f32.mxu0 0.0
    %2004 = vmatmul.mubr.f32.gmra.mrb[0].mxu0 %v1722
    %v2005 = vpop.f32.mrb[0].mxu0
    %v2006 = vadd.f32 0.0, %v2005
    %v2007 = vpop.f32.mrb[0].mxu0
    %2008 = vdwg.mxu0
    %v2009 = vadd.f32 %v1936, %v2006
    %v2010 = vtanh.pop %v2009
    %2011 = vmatprep.subr.mxu0 0.0
    %2012 = vmatpush1.msra.mxu0 %v104
    %2013 = vmatprep.subr.mxu0 0.0
    %2014 = vmatpush1.msra.mxu0 %v105
    %2015 = vmatprep.subr.mxu0 0.0
    %2016 = vmatpush1.msra.mxu0 %v106
    %2017 = vmatprep.subr.mxu0 0.0
    %2018 = vmatpush1.msra.mxu0 %v107
    %2019 = vmatprep.subr.mxu0 0.0
    %2020 = vmatpush1.msra.mxu0 %v108
    %2021 = vmatprep.subr.mxu0 0.0
    %2022 = vmatpush1.msra.mxu0 %v109
    %2023 = vmatprep.subr.mxu0 0.0
    %2024 = vmatpush1.msra.mxu0 %v110
    %2025 = vmatprep.subr.mxu0 0.0
    %2026 = vmatpush1.msra.mxu0 %v111
    %2027 = vmatprep.subr.mxu0 0.0
    %2028 = vmatpush1.msra.mxu0 %v112
    %2029 = vmatprep.subr.mxu0 0.0
    %2030 = vmatpush1.msra.mxu0 %v113
    %2031 = vmatprep.subr.mxu0 0.0
    %2032 = vmatpush1.msra.mxu0 %v114
    %2033 = vmatprep.subr.mxu0 0.0
    %2034 = vmatpush1.msra.mxu0 %v115
    %2035 = vmatprep.subr.mxu0 0.0
    %2036 = vmatpush1.msra.mxu0 %v116
    %2037 = vmatprep.subr.mxu0 0.0
    %2038 = vmatpush1.msra.mxu0 %v117
    %2039 = vmatprep.subr.mxu0 0.0
    %2040 = vmatpush1.msra.mxu0 %v118
    %2041 = vmatprep.subr.mxu0 0.0
    %2042 = vmatpush1.msra.mxu0 %v119
    %2043 = vmatprep.subr.mxu0 0.0
    %2044 = vmatpush1.msra.mxu0 0.0
    %2045 = vmatprep.subr.mxu0 0.0
    %2046 = vmatpush1.msra.mxu0 0.0
    %2047 = vmatprep.subr.mxu0 0.0
    %2048 = vmatpush1.msra.mxu0 0.0
    %2049 = vmatprep.subr.mxu0 0.0
    %2050 = vmatpush1.msra.mxu0 0.0
    %2051 = vmatprep.subr.mxu0 0.0
    %2052 = vmatpush1.msra.mxu0 0.0
    %2053 = vmatprep.subr.mxu0 0.0
    %2054 = vmatpush1.msra.mxu0 0.0
    %2055 = vmatprep.subr.mxu0 0.0
    %2056 = vmatpush1.msra.mxu0 0.0
    %2057 = vmatprep.subr.mxu0 0.0
    %2058 = vmatpush1.msra.mxu0 0.0
    %2059 = vmatprep.subr.mxu0 0.0
    %2060 = vmatpush1.msra.mxu0 0.0
    %2061 = vmatprep.subr.mxu0 0.0
    %2062 = vmatpush1.msra.mxu0 0.0
    %2063 = vmatprep.subr.mxu0 0.0
    %2064 = vmatpush1.msra.mxu0 0.0
    %2065 = vmatprep.subr.mxu0 0.0
    %2066 = vmatpush1.msra.mxu0 0.0
    %2067 = vmatprep.subr.mxu0 0.0
    %2068 = vmatpush1.msra.mxu0 0.0
    %2069 = vmatprep.subr.mxu0 0.0
    %2070 = vmatpush1.msra.mxu0 0.0
    %2071 = vmatprep.subr.mxu0 0.0
    %2072 = vmatpush1.msra.mxu0 0.0
    %2073 = vmatprep.subr.mxu0 0.0
    %2074 = vmatpush1.msra.mxu0 0.0
    %2075 = vmatprep.mubr.f32.mxu0 0.0
    %2076 = vmatmul.mubr.f32.gmra.mrb[0].mxu0 %v1864
    %v2077 = vpop.f32.mrb[0].mxu0
    %v2078 = vadd.f32 0.0, %v2077
    %v2079 = vpop.f32.mrb[0].mxu0
    %2080 = vdwg.mxu0
    %2081 = vmatprep.subr.mxu0 0.0
    %2082 = vmatpush1.msra.mxu0 %v88
    %2083 = vmatprep.subr.mxu0 0.0
    %2084 = vmatpush1.msra.mxu0 %v89
    %2085 = vmatprep.subr.mxu0 0.0
    %2086 = vmatpush1.msra.mxu0 %v90
    %2087 = vmatprep.subr.mxu0 0.0
    %2088 = vmatpush1.msra.mxu0 %v91
    %2089 = vmatprep.subr.mxu0 0.0
    %2090 = vmatpush1.msra.mxu0 %v92
    %2091 = vmatprep.subr.mxu0 0.0
    %2092 = vmatpush1.msra.mxu0 %v93
    %2093 = vmatprep.subr.mxu0 0.0
    %2094 = vmatpush1.msra.mxu0 %v94
    %2095 = vmatprep.subr.mxu0 0.0
    %2096 = vmatpush1.msra.mxu0 %v95
    %2097 = vmatprep.subr.mxu0 0.0
    %2098 = vmatpush1.msra.mxu0 %v96
    %2099 = vmatprep.subr.mxu0 0.0
    %2100 = vmatpush1.msra.mxu0 %v97
    %2101 = vmatprep.subr.mxu0 0.0
    %2102 = vmatpush1.msra.mxu0 %v98
    %2103 = vmatprep.subr.mxu0 0.0
    %2104 = vmatpush1.msra.mxu0 %v99
    %2105 = vmatprep.subr.mxu0 0.0
    %2106 = vmatpush1.msra.mxu0 %v100
    %2107 = vmatprep.subr.mxu0 0.0
    %2108 = vmatpush1.msra.mxu0 %v101
    %2109 = vmatprep.subr.mxu0 0.0
    %2110 = vmatpush1.msra.mxu0 %v102
    %2111 = vmatprep.subr.mxu0 0.0
    %2112 = vmatpush1.msra.mxu0 %v103
    %2113 = vmatprep.subr.mxu0 0.0
    %2114 = vmatpush1.msra.mxu0 0.0
    %2115 = vmatprep.subr.mxu0 0.0
    %2116 = vmatpush1.msra.mxu0 0.0
    %2117 = vmatprep.subr.mxu0 0.0
    %2118 = vmatpush1.msra.mxu0 0.0
    %2119 = vmatprep.subr.mxu0 0.0
    %2120 = vmatpush1.msra.mxu0 0.0
    %2121 = vmatprep.subr.mxu0 0.0
    %2122 = vmatpush1.msra.mxu0 0.0
    %2123 = vmatprep.subr.mxu0 0.0
    %2124 = vmatpush1.msra.mxu0 0.0
    %2125 = vmatprep.subr.mxu0 0.0
    %2126 = vmatpush1.msra.mxu0 0.0
    %2127 = vmatprep.subr.mxu0 0.0
    %2128 = vmatpush1.msra.mxu0 0.0
    %2129 = vmatprep.subr.mxu0 0.0
    %2130 = vmatpush1.msra.mxu0 0.0
    %2131 = vmatprep.subr.mxu0 0.0
    %2132 = vmatpush1.msra.mxu0 0.0
    %2133 = vmatprep.subr.mxu0 0.0
    %2134 = vmatpush1.msra.mxu0 0.0
    %2135 = vmatprep.subr.mxu0 0.0
    %2136 = vmatpush1.msra.mxu0 0.0
    %2137 = vmatprep.subr.mxu0 0.0
    %2138 = vmatpush1.msra.mxu0 0.0
    %2139 = vmatprep.subr.mxu0 0.0
    %2140 = vmatpush1.msra.mxu0 0.0
    %2141 = vmatprep.subr.mxu0 0.0
    %2142 = vmatpush1.msra.mxu0 0.0
    %2143 = vmatprep.subr.mxu0 0.0
    %2144 = vmatpush1.msra.mxu0 0.0
    %2145 = vmatprep.mubr.f32.mxu0 0.0
    %2146 = vmatmul.mubr.f32.gmra.mrb[0].mxu0 %v2010
    %v2147 = vpop.f32.mrb[0].mxu0
    %v2148 = vadd.f32 %v2078, %v2147
    %v2149 = vpop.f32.mrb[0].mxu0
    %2150 = vdwg.mxu0
    %v2151 = vadd.f32 %v2148, %v421
    %v2152 = vtanh.pop %v2151
    %v2153 = vld [vmem:[%s9] sm:$0xff]
    %v2154 = vld [vmem:[%s9 + $0x8] sm:$0xff]
    %v2155 = vld [vmem:[%s9 + $0x10] sm:$0xff]
    %v2156 = vld [vmem:[%s9 + $0x18] sm:$0xff]
    %v2157 = vld [vmem:[%s9 + $0x20] sm:$0xff]
    %v2158 = vld [vmem:[%s9 + $0x28] sm:$0xff]
    %v2159 = vld [vmem:[%s9 + $0x30] sm:$0xff]
    %v2160 = vld [vmem:[%s9 + $0x38] sm:$0xff]
    %v2161 = vld [vmem:[%s9 + $0x40] sm:$0xff]
    %v2162 = vld [vmem:[%s9 + $0x48] sm:$0xff]
    %v2163 = vld [vmem:[%s9 + $0x50] sm:$0xff]
    %v2164 = vld [vmem:[%s9 + $0x58] sm:$0xff]
    %v2165 = vld [vmem:[%s9 + $0x60] sm:$0xff]
    %v2166 = vld [vmem:[%s9 + $0x68] sm:$0xff]
    %v2167 = vld [vmem:[%s9 + $0x70] sm:$0xff]
    %v2168 = vld [vmem:[%s9 + $0x78] sm:$0xff]
    %v2169 = vld [vmem:[%s10] sm:$0x1]
    %v2171 = vlaneseq
    %v2172 = vshrl.u32 %v2171, 7
    %v2173 = vsub.s32 0, %v2172
    %v2174 = vrot.slane %v2169, %v2173
    %2176 = vmatprep.subr.mxu0 0.0
    %2177 = vmatpush1.msra.mxu0 %v2153
    %2178 = vmatprep.subr.mxu0 0.0
    %2179 = vmatpush1.msra.mxu0 %v2154
    %2180 = vmatprep.subr.mxu0 0.0
    %2181 = vmatpush1.msra.mxu0 %v2155
    %2182 = vmatprep.subr.mxu0 0.0
    %2183 = vmatpush1.msra.mxu0 %v2156
    %2184 = vmatprep.subr.mxu0 0.0
    %2185 = vmatpush1.msra.mxu0 %v2157
    %2186 = vmatprep.subr.mxu0 0.0
    %2187 = vmatpush1.msra.mxu0 %v2158
    %2188 = vmatprep.subr.mxu0 0.0
    %2189 = vmatpush1.msra.mxu0 %v2159
    %2190 = vmatprep.subr.mxu0 0.0
    %2191 = vmatpush1.msra.mxu0 %v2160
    %2192 = vmatprep.subr.mxu0 0.0
    %2193 = vmatpush1.msra.mxu0 %v2161
    %2194 = vmatprep.subr.mxu0 0.0
    %2195 = vmatpush1.msra.mxu0 %v2162
    %2196 = vmatprep.subr.mxu0 0.0
    %2197 = vmatpush1.msra.mxu0 %v2163
    %2198 = vmatprep.subr.mxu0 0.0
    %2199 = vmatpush1.msra.mxu0 %v2164
    %2200 = vmatprep.subr.mxu0 0.0
    %2201 = vmatpush1.msra.mxu0 %v2165
    %2202 = vmatprep.subr.mxu0 0.0
    %2203 = vmatpush1.msra.mxu0 %v2166
    %2204 = vmatprep.subr.mxu0 0.0
    %2205 = vmatpush1.msra.mxu0 %v2167
    %2206 = vmatprep.subr.mxu0 0.0
    %2207 = vmatpush1.msra.mxu0 %v2168
    %2208 = vmatprep.subr.mxu0 0.0
    %2209 = vmatpush1.msra.mxu0 0.0
    %2210 = vmatprep.subr.mxu0 0.0
    %2211 = vmatpush1.msra.mxu0 0.0
    %2212 = vmatprep.subr.mxu0 0.0
    %2213 = vmatpush1.msra.mxu0 0.0
    %2214 = vmatprep.subr.mxu0 0.0
    %2215 = vmatpush1.msra.mxu0 0.0
    %2216 = vmatprep.subr.mxu0 0.0
    %2217 = vmatpush1.msra.mxu0 0.0
    %2218 = vmatprep.subr.mxu0 0.0
    %2219 = vmatpush1.msra.mxu0 0.0
    %2220 = vmatprep.subr.mxu0 0.0
    %2221 = vmatpush1.msra.mxu0 0.0
    %2222 = vmatprep.subr.mxu0 0.0
    %2223 = vmatpush1.msra.mxu0 0.0
    %2224 = vmatprep.subr.mxu0 0.0
    %2225 = vmatpush1.msra.mxu0 0.0
    %2226 = vmatprep.subr.mxu0 0.0
    %2227 = vmatpush1.msra.mxu0 0.0
    %2228 = vmatprep.subr.mxu0 0.0
    %2229 = vmatpush1.msra.mxu0 0.0
    %2230 = vmatprep.subr.mxu0 0.0
    %2231 = vmatpush1.msra.mxu0 0.0
    %2232 = vmatprep.subr.mxu0 0.0
    %2233 = vmatpush1.msra.mxu0 0.0
    %2234 = vmatprep.subr.mxu0 0.0
    %2235 = vmatpush1.msra.mxu0 0.0
    %2236 = vmatprep.subr.mxu0 0.0
    %2237 = vmatpush1.msra.mxu0 0.0
    %2238 = vmatprep.subr.mxu0 0.0
    %2239 = vmatpush1.msra.mxu0 0.0
    %2240 = vmatprep.mubr.f32.mxu0 0.0
    %2241 = vmatmul.mubr.f32.gmra.mrb[0].mxu0 %v2152
    %v2242 = vpop.f32.mrb[0].mxu0
    %v2243 = vadd.f32 %v2174, %v2242
    %v2244 = vpop.f32.mrb[0].mxu0
    %2245 = vdwg.mxu0
    %v2246 = vadd.f32 %v40, 1e-10
    %v2247 = vrcp.pop %v2246
    %v2248 = vmul.f32 %v56, %v2247
    %v2249 = vsub.f32 %v2243, %v67
    %2251 = vset.pattern.permute.xlu0 0
    %2252 = vperm.xlu0 %2251, %v2248
    %v2253 = vpop.permute.xlu0 %2252
    %v2255 = vmul.f32 %v2249, %v2253
    %v2256 = vadd.f32 %v2255, %v47
    %2257 = vst [vmem:[#allocation2] sm:$0xff] %v2256
    // Predicated region
    $region46: #{prnn_backbone_pallas.1} parent=1 // pred_check
      _
    $region47: #{prnn_backbone_pallas.1} parent=1 // pred_check_branch
      %2259 = sbr.rel (0) target = $region49
    $region48: #{prnn_backbone_pallas.1} parent=1 // pred_region
      %s2261 = ssub.s32 128, 128
      %2262 = vsyncadd [#allocation3], %s2261
      %s2264 = sshll.u32 [#allocation2], 4
      %s2265 = int_to_ptr.vmem [resolvable:$true] %s2264
      %2267 = dma.vmem_to_hbm [thread:$0]  %s2265, 128, %s11, [#allocation3]
    $region49: #{prnn_backbone_pallas.1} parent=1 // pred_fallthru
      _
    // Predicated region
    $region50: #{prnn_backbone_pallas.1} parent=1 // pred_check
      _
    $region51: #{prnn_backbone_pallas.1} parent=1 // pred_check_branch
      %2269 = sbr.rel (0) target = $region53
    $region52: #{prnn_backbone_pallas.1} parent=1 // pred_region
      %2270 = dma.done [#allocation3], 128
    $region53: #{prnn_backbone_pallas.1} parent=1 // pred_fallthru
      _
    %2271 = vsyncpa [#allocation3], 1

</llo_original>
